<compile_context>
chip_gen: v5e
topology: v5e:2x2
jax: 0.10.0
libtpu: 0.0.40
codegen_flags: <defaults>
</compile_context>

<pallas_src>
from functools import partial
import math

import jax
import jax.numpy as jnp
from jax.experimental import pallas as pl
from jax.experimental.pallas import tpu as pltpu


_LANE = 128
_SUBLANE = 8
_FULL_UNROLL_MAX_T = 32          # fully unroll the recurrence below this T
_GATE_PERM = (0, 1, 3, 2)        # torch gate order (i, f, g, o) -> packed (i, f, o, g)


def _round_up(x, m):
    return ((x + m - 1) // m) * m


def _pick_batch_tile(B, T, Hp):
    """Batch tile: >= 8 rows (f32 sublane), <= 128; shrink if the per-tile
    xw scratch [T*Bt, 4Hp] f32 would exceed ~16 MiB (VMEM headroom on v7x)."""
    bt = min(_round_up(B, _SUBLANE), 128)
    while bt > _SUBLANE and T * bt * 4 * Hp * 4 > (16 << 20):
        bt = _round_up(bt // 2, _SUBLANE)
    return bt


def lstm_fc_kernel(x_ref, wih_ref, whh_ref, b_ref, wfc_ref, bfc_ref,
                   out_ref, xw_ref, *, batch_tile, seq_len):
    Bt, T = batch_tile, seq_len
    Hp = whh_ref.shape[0]

    # --- Hoisted input projection (one big MXU matmul, fused bias) into a
    # VMEM scratch: per-step reads become contiguous static slabs, and the
    # [T*Bt, 4Hp] activation never sits in vregs across the recurrence.
    xw_ref[...] = (
        jnp.dot(x_ref[...], wih_ref[...], preferred_element_type=jnp.float32)
        + b_ref[...])

    def cell(xw_t, h, c):
        # Serial critical path per step: h @ W_hh (MXU) + gate nonlinearities.
        gates = xw_t + jnp.dot(h.astype(jnp.bfloat16), whh_ref[...],
                               preferred_element_type=jnp.float32)
        # Packed gate order (i, f, o, g): sigmoid once on the contiguous
        # [Bt, 3Hp] slab, tanh on the last [Bt, Hp] slab.
        sig = jax.nn.sigmoid(gates[:, :3 * Hp])
        g_g = jnp.tanh(gates[:, 3 * Hp:])
        i_g = sig[:, :Hp]
        f_g = sig[:, Hp:2 * Hp]
        o_g = sig[:, 2 * Hp:]
        c_new = f_g * c + i_g * g_g
        h_new = o_g * jnp.tanh(c_new)
        return h_new, c_new

    h = jnp.zeros((Bt, Hp), jnp.float32)
    c = jnp.zeros((Bt, Hp), jnp.float32)

    if T <= _FULL_UNROLL_MAX_T:
        # Short T: straight-line code, all xw reads are static slices.
        for t in range(T):
            h, c = cell(xw_ref[t * Bt:(t + 1) * Bt, :], h, c)
    else:
        # Long T: bounded unroll keeps scheduler visibility without blowing
        # up code size / live ranges (Python `for` does not bound them).
        def body(t, carry):
            hh, cc = carry
            row = pl.multiple_of(t * Bt, _SUBLANE)
            return cell(xw_ref[pl.ds(row, Bt), :], hh, cc)
        h, c = jax.lax.fori_loop(0, T, body, (h, c), unroll=8)

    # --- Fused FC on the last hidden state; Cp padded -> lane-dense store.
    out_ref[...] = (
        jnp.dot(h.astype(jnp.bfloat16), wfc_ref[...],
                preferred_element_type=jnp.float32)
        + bfc_ref[...]).astype(out_ref.dtype)


def _pack_gate_cols(w, H, Hp):
    """[rows, 4H] torch order (i,f,g,o) -> [rows, 4Hp] packed order (i,f,o,g),
    each gate block zero-padded to Hp columns (lane-aligned slabs)."""
    blocks = []
    for k in _GATE_PERM:
        blk = w[:, k * H:(k + 1) * H]
        blocks.append(jnp.pad(blk, ((0, 0), (0, Hp - H))))
    return jnp.concatenate(blocks, axis=1)


def rnn_forward(tokens, params):
    """tokens: [B, T] int32. Returns logits [B, num_class] float32."""
    emb_table = params["embedding"]            # [V, E]
    w_ih = params["w_ih"]                      # [E, 4H]  (transposed torch weight_ih_l0)
    w_hh = params["w_hh"]                      # [H, 4H]  (transposed torch weight_hh_l0)
    b = params["b"]                            # [1, 4H]  (b_ih + b_hh)
    w_fc = params["w_fc"]                      # [H, C]   (transposed torch fc.weight)
    b_fc = params["b_fc"]                      # [1, C]

    B, T = tokens.shape
    E = emb_table.shape[1]
    H = w_hh.shape[0]
    C = w_fc.shape[1]
    Hp = _round_up(H, _LANE)                   # lane-aligned gate slabs
    Cp = _round_up(C, _LANE)                   # lane-dense output store

    Bt = _pick_batch_tile(B, T, Hp)            # sublane-aligned batch tile
    Bp = _round_up(B, Bt)
    nb = Bp // Bt

    # --- Embedding gather (glue), already in batch-tiled time-major layout:
    # rearrange the small int32 ids (cheap) so the gather output needs no
    # further transpose: row (tile b, t, j) of x is token (b*Bt + j, t).
    tokens_p = jnp.pad(tokens, ((0, Bp - B), (0, 0)))              # pad batch (index 0 is valid)
    ids = tokens_p.T.reshape(T, nb, Bt).transpose(1, 0, 2).reshape(nb * T * Bt)
    x = jnp.take(emb_table, ids, axis=0).astype(jnp.bfloat16)      # [nb*T*Bt, E]

    # --- Pack / pad weights (zero padding is a mathematical no-op), bf16 MXU
    # operands; biases stay f32.
    w_ih_p = _pack_gate_cols(w_ih, H, Hp).astype(jnp.bfloat16)                     # [E, 4Hp]
    w_hh_p = _pack_gate_cols(jnp.pad(w_hh, ((0, Hp - H), (0, 0))), H, Hp
                             ).astype(jnp.bfloat16)                                # [Hp, 4Hp]
    b_p = _pack_gate_cols(b, H, Hp).astype(jnp.float32)                            # [1, 4Hp]
    w_fc_p = jnp.pad(w_fc, ((0, Hp - H), (0, Cp - C))).astype(jnp.bfloat16)        # [Hp, Cp]
    b_fc_p = jnp.pad(b_fc, ((0, 0), (0, Cp - C))).astype(jnp.float32)              # [1, Cp]

    # --- Explicit VMEM budget (only raised above the default when needed).
    def _nbytes(shape, dtype):
        return math.prod(shape) * jnp.dtype(dtype).itemsize
    in_bytes = (_nbytes((T * Bt, E), jnp.bfloat16)
                + _nbytes((E, 4 * Hp), jnp.bfloat16)
                + _nbytes((Hp, 4 * Hp), jnp.bfloat16)
                + _nbytes((1, 4 * Hp), jnp.float32)
                + _nbytes((Hp, Cp), jnp.bfloat16)
                + _nbytes((1, Cp), jnp.float32))
    out_bytes = _nbytes((Bt, Cp), jnp.float32)
    scratch_bytes = _nbytes((T * Bt, 4 * Hp), jnp.float32)
    vmem_needed = 2 * (in_bytes + out_bytes) + scratch_bytes + (4 << 20)
    vmem_limit = None if vmem_needed <= (32 << 20) else int(min(vmem_needed, 128 << 20))

    grid_spec = pltpu.PrefetchScalarGridSpec(
        num_scalar_prefetch=0,
        grid=(nb,),                                              # batch-tiled, parallel
        in_specs=[
            pl.BlockSpec((T * Bt, E), lambda b: (b, 0)),         # time-major x per batch tile
            pl.BlockSpec((E, 4 * Hp), lambda b: (0, 0)),         # W_ih (resident)
            pl.BlockSpec((Hp, 4 * Hp), lambda b: (0, 0)),        # W_hh (resident)
            pl.BlockSpec((1, 4 * Hp), lambda b: (0, 0)),         # fused bias
            pl.BlockSpec((Hp, Cp), lambda b: (0, 0)),            # fc weight
            pl.BlockSpec((1, Cp), lambda b: (0, 0)),             # fc bias
        ],
        out_specs=pl.BlockSpec((Bt, Cp), lambda b: (b, 0)),
        scratch_shapes=[pltpu.VMEM((T * Bt, 4 * Hp), jnp.float32)],  # hoisted xw
    )

    out_padded = pl.pallas_call(
        partial(lstm_fc_kernel, batch_tile=Bt, seq_len=T),
        grid_spec=grid_spec,
        out_shape=jax.ShapeDtypeStruct((Bp, Cp), jnp.float32),
        compiler_params=pltpu.CompilerParams(
            dimension_semantics=("parallel",),
            vmem_limit_bytes=vmem_limit),
    )(x, w_ih_p, w_hh_p, b_p, w_fc_p, b_fc_p)

    return out_padded[:B, :C]


def init_params(key, vocab_size, embed_dim, hidden_dim, num_class):
    ks = jax.random.split(key, 7)
    scale = 0.1
    embedding = jax.random.normal(ks[0], (vocab_size, embed_dim), jnp.float32)
    # PyTorch stores weight_ih_l0 as [4H, E]; we keep the transposed [E, 4H] form.
    w_ih = scale * jax.random.normal(ks[1], (embed_dim, 4 * hidden_dim), jnp.float32)
    w_hh = scale * jax.random.normal(ks[2], (hidden_dim, 4 * hidden_dim), jnp.float32)
    b_ih = scale * jax.random.normal(ks[3], (4 * hidden_dim,), jnp.float32)
    b_hh = scale * jax.random.normal(ks[4], (4 * hidden_dim,), jnp.float32)
    w_fc = scale * jax.random.normal(ks[5], (hidden_dim, num_class), jnp.float32)
    b_fc = scale * jax.random.normal(ks[6], (num_class,), jnp.float32)
    return {
        "embedding": embedding,
        "w_ih": w_ih,
        "w_hh": w_hh,
        "b": (b_ih + b_hh).reshape(1, -1),
        "w_fc": w_fc,
        "b_fc": b_fc.reshape(1, -1),
    }


def _lstm_ref(tokens, params, *, mxu_bf16):
    """Pure-JAX reference with PyTorch LSTM semantics (gate order i,f,g,o).
    mxu_bf16=True mimics the kernel's bf16 MXU operands / f32 accumulation;
    mxu_bf16=False is a full-f32 reference (PyTorch numerics)."""
    emb = jnp.take(params["embedding"], tokens, axis=0)      # [B, T, E]
    B, T, E = emb.shape
    H = params["w_hh"].shape[0]

    if mxu_bf16:
        cast = lambda a: a.astype(jnp.bfloat16)
        dot = lambda a, b: jnp.dot(a, b, preferred_element_type=jnp.float32)
    else:
        cast = lambda a: a
        dot = lambda a, b: jnp.dot(a, b, precision=jax.lax.Precision.HIGHEST)

    w_ih, w_hh, w_fc = cast(params["w_ih"]), cast(params["w_hh"]), cast(params["w_fc"])
    x = cast(emb.reshape(B * T, E))
    xw = (dot(x, w_ih) + params["b"]).reshape(B, T, 4 * H)

    h = jnp.zeros((B, H), jnp.float32)
    c = jnp.zeros((B, H), jnp.float32)
    for t in range(T):
        gates = xw[:, t, :] + dot(cast(h), w_hh)
        i_g = jax.nn.sigmoid(gates[:, 0 * H:1 * H])
        f_g = jax.nn.sigmoid(gates[:, 1 * H:2 * H])
        g_g = jnp.tanh(gates[:, 2 * H:3 * H])
        o_g = jax.nn.sigmoid(gates[:, 3 * H:4 * H])
        c = f_g * c + i_g * g_g
        h = o_g * jnp.tanh(c)
    return dot(cast(h), w_fc) + params["b_fc"]


if __name__ == "__main__":
    # Small shapes consistent with the module's forward.
    batch, seq_len = 2, 8
    vocab_size, embed_dim, hidden_dim, num_class = 50, 32, 32, 5

    key = jax.random.PRNGKey(0)
    k_tok, k_par = jax.random.split(key)
    tokens = jax.random.randint(k_tok, (batch, seq_len), 0, vocab_size, dtype=jnp.int32)
    params = init_params(k_par, vocab_size, embed_dim, hidden_dim, num_class)

    logits = jax.jit(rnn_forward)(tokens, params)
    jax.block_until_ready(logits)
    assert logits.shape == (batch, num_class)

    # Tight check vs a reference with matching bf16 MXU rounding.
    ref_bf16 = _lstm_ref(tokens, params, mxu_bf16=True)
    assert jnp.allclose(logits, ref_bf16, atol=2e-3, rtol=2e-3), "mismatch vs bf16-MXU reference"

    # Looser check vs a full-f32 (PyTorch-numerics) reference.
    ref_f32 = _lstm_ref(tokens, params, mxu_bf16=False)
    assert jnp.allclose(logits, ref_f32, atol=3e-2, rtol=3e-2), "mismatch vs f32 reference"

    print("KERNEL_OK")
</pallas_src>

<mosaic_0001>
module attributes {stable_mosaic.version = 11 : i64} {
  func.func @lstm_fc_kernel(%arg0: i32, %arg1: memref<64x32xbf16, #tpu.memory_space<vmem>>, %arg2: memref<32x512xbf16, #tpu.memory_space<vmem>>, %arg3: memref<128x512xbf16, #tpu.memory_space<vmem>>, %arg4: memref<1x512xf32, #tpu.memory_space<vmem>>, %arg5: memref<128x128xbf16, #tpu.memory_space<vmem>>, %arg6: memref<1x128xf32, #tpu.memory_space<vmem>>, %arg7: memref<8x128xf32, #tpu.memory_space<vmem>>, %arg8: memref<64x512xf32, #tpu.memory_space<vmem>>) attributes {dimension_semantics = [#tpu.dimension_semantics<parallel>], iteration_bounds = array<i64: 1>, scalar_prefetch = 0 : i64, scratch_operands = 1 : i64, tpu.core_type = #tpu.core_type<tc>, window_params = [{transform_indices = @transform_0, window_bounds = array<i64: 64, 32>}, {pipeline_mode = #tpu.pipeline_mode<synchronous>, transform_indices = @transform_1, window_bounds = array<i64: 32, 512>}, {pipeline_mode = #tpu.pipeline_mode<synchronous>, transform_indices = @transform_2, window_bounds = array<i64: 128, 512>}, {pipeline_mode = #tpu.pipeline_mode<synchronous>, transform_indices = @transform_3, window_bounds = array<i64: 1, 512>}, {pipeline_mode = #tpu.pipeline_mode<synchronous>, transform_indices = @transform_4, window_bounds = array<i64: 128, 128>}, {pipeline_mode = #tpu.pipeline_mode<synchronous>, transform_indices = @transform_5, window_bounds = array<i64: 1, 128>}, {transform_indices = @transform_6, window_bounds = array<i64: 8, 128>}]} {
    %c0 = arith.constant 0 : index
    %c0_0 = arith.constant 0 : index
    %0 = vector.load %arg1[%c0, %c0_0] : memref<64x32xbf16, #tpu.memory_space<vmem>>, vector<64x32xbf16>
    %c0_1 = arith.constant 0 : index
    %c0_2 = arith.constant 0 : index
    %1 = vector.load %arg2[%c0_1, %c0_2] : memref<32x512xbf16, #tpu.memory_space<vmem>>, vector<32x512xbf16>
    %cst = arith.constant dense<0.000000e+00> : vector<64x512xf32>
    %2 = tpu.matmul %0, %1, %cst {dimension_numbers = #tpu.dot_dimension_numbers<[1], [0], [0], [1], [0, 0, 1, 1], [], []>} : vector<64x32xbf16>, vector<32x512xbf16>, vector<64x512xf32> -> vector<64x512xf32>
    %c0_3 = arith.constant 0 : index
    %c0_4 = arith.constant 0 : index
    %3 = vector.load %arg4[%c0_3, %c0_4] : memref<1x512xf32, #tpu.memory_space<vmem>>, vector<1x512xf32>
    %4 = vector.broadcast %3 : vector<1x512xf32> to vector<64x512xf32>
    %5 = arith.addf %2, %4 : vector<64x512xf32>
    %c0_5 = arith.constant 0 : index
    %c0_6 = arith.constant 0 : index
    %6 = vector.load %arg8[%c0_5, %c0_6] : memref<64x512xf32, #tpu.memory_space<vmem>>, vector<64x512xf32>
    tpu.vector_store %arg8[%c0_5, %c0_6], %5 {strides = array<i32>} : memref<64x512xf32, #tpu.memory_space<vmem>>, vector<64x512xf32>,
    %cst_7 = arith.constant 0.000000e+00 : f32
    %7 = vector.broadcast %cst_7 : f32 to vector<8x128xf32>
    %cst_8 = arith.constant 0.000000e+00 : f32
    %8 = vector.broadcast %cst_8 : f32 to vector<8x128xf32>
    %c0_9 = arith.constant 0 : index
    %c0_10 = arith.constant 0 : index
    %9 = vector.load %arg8[%c0_9, %c0_10] : memref<64x512xf32, #tpu.memory_space<vmem>>, vector<8x512xf32>
    %10 = arith.truncf %7 : vector<8x128xf32> to vector<8x128xbf16>
    %c0_11 = arith.constant 0 : index
    %c0_12 = arith.constant 0 : index
    %11 = vector.load %arg3[%c0_11, %c0_12] : memref<128x512xbf16, #tpu.memory_space<vmem>>, vector<128x512xbf16>
    %cst_13 = arith.constant dense<0.000000e+00> : vector<8x512xf32>
    %12 = tpu.matmul %10, %11, %cst_13 {dimension_numbers = #tpu.dot_dimension_numbers<[1], [0], [0], [1], [0, 0, 1, 1], [], []>} : vector<8x128xbf16>, vector<128x512xbf16>, vector<8x512xf32> -> vector<8x512xf32>
    %13 = arith.addf %9, %12 : vector<8x512xf32>
    %14 = vector.extract_strided_slice %13 {offsets = [0, 0], sizes = [8, 384], strides = [1, 1]} : vector<8x512xf32> to vector<8x384xf32>
    %15 = arith.negf %14 : vector<8x384xf32>
    %16 = math.exp %15 : vector<8x384xf32>
    %cst_14 = arith.constant 1.000000e+00 : f32
    %17 = vector.broadcast %cst_14 : f32 to vector<8x384xf32>
    %18 = arith.addf %17, %16 : vector<8x384xf32>
    %19 = arith.divf %17, %18 : vector<8x384xf32>
    %20 = vector.extract_strided_slice %13 {offsets = [0, 384], sizes = [8, 128], strides = [1, 1]} : vector<8x512xf32> to vector<8x128xf32>
    %21 = math.tanh %20 : vector<8x128xf32>
    %22 = vector.extract_strided_slice %19 {offsets = [0, 0], sizes = [8, 128], strides = [1, 1]} : vector<8x384xf32> to vector<8x128xf32>
    %23 = vector.extract_strided_slice %19 {offsets = [0, 128], sizes = [8, 128], strides = [1, 1]} : vector<8x384xf32> to vector<8x128xf32>
    %24 = vector.extract_strided_slice %19 {offsets = [0, 256], sizes = [8, 128], strides = [1, 1]} : vector<8x384xf32> to vector<8x128xf32>
    %25 = arith.mulf %23, %8 : vector<8x128xf32>
    %26 = arith.mulf %22, %21 : vector<8x128xf32>
    %27 = arith.addf %25, %26 : vector<8x128xf32>
    %28 = math.tanh %27 : vector<8x128xf32>
    %29 = arith.mulf %24, %28 : vector<8x128xf32>
    %c8 = arith.constant 8 : index
    %c0_15 = arith.constant 0 : index
    %30 = vector.load %arg8[%c8, %c0_15] : memref<64x512xf32, #tpu.memory_space<vmem>>, vector<8x512xf32>
    %31 = arith.truncf %29 : vector<8x128xf32> to vector<8x128xbf16>
    %c0_16 = arith.constant 0 : index
    %c0_17 = arith.constant 0 : index
    %32 = vector.load %arg3[%c0_16, %c0_17] : memref<128x512xbf16, #tpu.memory_space<vmem>>, vector<128x512xbf16>
    %cst_18 = arith.constant dense<0.000000e+00> : vector<8x512xf32>
    %33 = tpu.matmul %31, %32, %cst_18 {dimension_numbers = #tpu.dot_dimension_numbers<[1], [0], [0], [1], [0, 0, 1, 1], [], []>} : vector<8x128xbf16>, vector<128x512xbf16>, vector<8x512xf32> -> vector<8x512xf32>
    %34 = arith.addf %30, %33 : vector<8x512xf32>
    %35 = vector.extract_strided_slice %34 {offsets = [0, 0], sizes = [8, 384], strides = [1, 1]} : vector<8x512xf32> to vector<8x384xf32>
    %36 = arith.negf %35 : vector<8x384xf32>
    %37 = math.exp %36 : vector<8x384xf32>
    %cst_19 = arith.constant 1.000000e+00 : f32
    %38 = vector.broadcast %cst_19 : f32 to vector<8x384xf32>
    %39 = arith.addf %38, %37 : vector<8x384xf32>
    %40 = arith.divf %38, %39 : vector<8x384xf32>
    %41 = vector.extract_strided_slice %34 {offsets = [0, 384], sizes = [8, 128], strides = [1, 1]} : vector<8x512xf32> to vector<8x128xf32>
    %42 = math.tanh %41 : vector<8x128xf32>
    %43 = vector.extract_strided_slice %40 {offsets = [0, 0], sizes = [8, 128], strides = [1, 1]} : vector<8x384xf32> to vector<8x128xf32>
    %44 = vector.extract_strided_slice %40 {offsets = [0, 128], sizes = [8, 128], strides = [1, 1]} : vector<8x384xf32> to vector<8x128xf32>
    %45 = vector.extract_strided_slice %40 {offsets = [0, 256], sizes = [8, 128], strides = [1, 1]} : vector<8x384xf32> to vector<8x128xf32>
    %46 = arith.mulf %44, %27 : vector<8x128xf32>
    %47 = arith.mulf %43, %42 : vector<8x128xf32>
    %48 = arith.addf %46, %47 : vector<8x128xf32>
    %49 = math.tanh %48 : vector<8x128xf32>
    %50 = arith.mulf %45, %49 : vector<8x128xf32>
    %c16 = arith.constant 16 : index
    %c0_20 = arith.constant 0 : index
    %51 = vector.load %arg8[%c16, %c0_20] : memref<64x512xf32, #tpu.memory_space<vmem>>, vector<8x512xf32>
    %52 = arith.truncf %50 : vector<8x128xf32> to vector<8x128xbf16>
    %c0_21 = arith.constant 0 : index
    %c0_22 = arith.constant 0 : index
    %53 = vector.load %arg3[%c0_21, %c0_22] : memref<128x512xbf16, #tpu.memory_space<vmem>>, vector<128x512xbf16>
    %cst_23 = arith.constant dense<0.000000e+00> : vector<8x512xf32>
    %54 = tpu.matmul %52, %53, %cst_23 {dimension_numbers = #tpu.dot_dimension_numbers<[1], [0], [0], [1], [0, 0, 1, 1], [], []>} : vector<8x128xbf16>, vector<128x512xbf16>, vector<8x512xf32> -> vector<8x512xf32>
    %55 = arith.addf %51, %54 : vector<8x512xf32>
    %56 = vector.extract_strided_slice %55 {offsets = [0, 0], sizes = [8, 384], strides = [1, 1]} : vector<8x512xf32> to vector<8x384xf32>
    %57 = arith.negf %56 : vector<8x384xf32>
    %58 = math.exp %57 : vector<8x384xf32>
    %cst_24 = arith.constant 1.000000e+00 : f32
    %59 = vector.broadcast %cst_24 : f32 to vector<8x384xf32>
    %60 = arith.addf %59, %58 : vector<8x384xf32>
    %61 = arith.divf %59, %60 : vector<8x384xf32>
    %62 = vector.extract_strided_slice %55 {offsets = [0, 384], sizes = [8, 128], strides = [1, 1]} : vector<8x512xf32> to vector<8x128xf32>
    %63 = math.tanh %62 : vector<8x128xf32>
    %64 = vector.extract_strided_slice %61 {offsets = [0, 0], sizes = [8, 128], strides = [1, 1]} : vector<8x384xf32> to vector<8x128xf32>
    %65 = vector.extract_strided_slice %61 {offsets = [0, 128], sizes = [8, 128], strides = [1, 1]} : vector<8x384xf32> to vector<8x128xf32>
    %66 = vector.extract_strided_slice %61 {offsets = [0, 256], sizes = [8, 128], strides = [1, 1]} : vector<8x384xf32> to vector<8x128xf32>
    %67 = arith.mulf %65, %48 : vector<8x128xf32>
    %68 = arith.mulf %64, %63 : vector<8x128xf32>
    %69 = arith.addf %67, %68 : vector<8x128xf32>
    %70 = math.tanh %69 : vector<8x128xf32>
    %71 = arith.mulf %66, %70 : vector<8x128xf32>
    %c24 = arith.constant 24 : index
    %c0_25 = arith.constant 0 : index
    %72 = vector.load %arg8[%c24, %c0_25] : memref<64x512xf32, #tpu.memory_space<vmem>>, vector<8x512xf32>
    %73 = arith.truncf %71 : vector<8x128xf32> to vector<8x128xbf16>
    %c0_26 = arith.constant 0 : index
    %c0_27 = arith.constant 0 : index
    %74 = vector.load %arg3[%c0_26, %c0_27] : memref<128x512xbf16, #tpu.memory_space<vmem>>, vector<128x512xbf16>
    %cst_28 = arith.constant dense<0.000000e+00> : vector<8x512xf32>
    %75 = tpu.matmul %73, %74, %cst_28 {dimension_numbers = #tpu.dot_dimension_numbers<[1], [0], [0], [1], [0, 0, 1, 1], [], []>} : vector<8x128xbf16>, vector<128x512xbf16>, vector<8x512xf32> -> vector<8x512xf32>
    %76 = arith.addf %72, %75 : vector<8x512xf32>
    %77 = vector.extract_strided_slice %76 {offsets = [0, 0], sizes = [8, 384], strides = [1, 1]} : vector<8x512xf32> to vector<8x384xf32>
    %78 = arith.negf %77 : vector<8x384xf32>
    %79 = math.exp %78 : vector<8x384xf32>
    %cst_29 = arith.constant 1.000000e+00 : f32
    %80 = vector.broadcast %cst_29 : f32 to vector<8x384xf32>
    %81 = arith.addf %80, %79 : vector<8x384xf32>
    %82 = arith.divf %80, %81 : vector<8x384xf32>
    %83 = vector.extract_strided_slice %76 {offsets = [0, 384], sizes = [8, 128], strides = [1, 1]} : vector<8x512xf32> to vector<8x128xf32>
    %84 = math.tanh %83 : vector<8x128xf32>
    %85 = vector.extract_strided_slice %82 {offsets = [0, 0], sizes = [8, 128], strides = [1, 1]} : vector<8x384xf32> to vector<8x128xf32>
    %86 = vector.extract_strided_slice %82 {offsets = [0, 128], sizes = [8, 128], strides = [1, 1]} : vector<8x384xf32> to vector<8x128xf32>
    %87 = vector.extract_strided_slice %82 {offsets = [0, 256], sizes = [8, 128], strides = [1, 1]} : vector<8x384xf32> to vector<8x128xf32>
    %88 = arith.mulf %86, %69 : vector<8x128xf32>
    %89 = arith.mulf %85, %84 : vector<8x128xf32>
    %90 = arith.addf %88, %89 : vector<8x128xf32>
    %91 = math.tanh %90 : vector<8x128xf32>
    %92 = arith.mulf %87, %91 : vector<8x128xf32>
    %c32 = arith.constant 32 : index
    %c0_30 = arith.constant 0 : index
    %93 = vector.load %arg8[%c32, %c0_30] : memref<64x512xf32, #tpu.memory_space<vmem>>, vector<8x512xf32>
    %94 = arith.truncf %92 : vector<8x128xf32> to vector<8x128xbf16>
    %c0_31 = arith.constant 0 : index
    %c0_32 = arith.constant 0 : index
    %95 = vector.load %arg3[%c0_31, %c0_32] : memref<128x512xbf16, #tpu.memory_space<vmem>>, vector<128x512xbf16>
    %cst_33 = arith.constant dense<0.000000e+00> : vector<8x512xf32>
    %96 = tpu.matmul %94, %95, %cst_33 {dimension_numbers = #tpu.dot_dimension_numbers<[1], [0], [0], [1], [0, 0, 1, 1], [], []>} : vector<8x128xbf16>, vector<128x512xbf16>, vector<8x512xf32> -> vector<8x512xf32>
    %97 = arith.addf %93, %96 : vector<8x512xf32>
    %98 = vector.extract_strided_slice %97 {offsets = [0, 0], sizes = [8, 384], strides = [1, 1]} : vector<8x512xf32> to vector<8x384xf32>
    %99 = arith.negf %98 : vector<8x384xf32>
    %100 = math.exp %99 : vector<8x384xf32>
    %cst_34 = arith.constant 1.000000e+00 : f32
    %101 = vector.broadcast %cst_34 : f32 to vector<8x384xf32>
    %102 = arith.addf %101, %100 : vector<8x384xf32>
    %103 = arith.divf %101, %102 : vector<8x384xf32>
    %104 = vector.extract_strided_slice %97 {offsets = [0, 384], sizes = [8, 128], strides = [1, 1]} : vector<8x512xf32> to vector<8x128xf32>
    %105 = math.tanh %104 : vector<8x128xf32>
    %106 = vector.extract_strided_slice %103 {offsets = [0, 0], sizes = [8, 128], strides = [1, 1]} : vector<8x384xf32> to vector<8x128xf32>
    %107 = vector.extract_strided_slice %103 {offsets = [0, 128], sizes = [8, 128], strides = [1, 1]} : vector<8x384xf32> to vector<8x128xf32>
    %108 = vector.extract_strided_slice %103 {offsets = [0, 256], sizes = [8, 128], strides = [1, 1]} : vector<8x384xf32> to vector<8x128xf32>
    %109 = arith.mulf %107, %90 : vector<8x128xf32>
    %110 = arith.mulf %106, %105 : vector<8x128xf32>
    %111 = arith.addf %109, %110 : vector<8x128xf32>
    %112 = math.tanh %111 : vector<8x128xf32>
    %113 = arith.mulf %108, %112 : vector<8x128xf32>
    %c40 = arith.constant 40 : index
    %c0_35 = arith.constant 0 : index
    %114 = vector.load %arg8[%c40, %c0_35] : memref<64x512xf32, #tpu.memory_space<vmem>>, vector<8x512xf32>
    %115 = arith.truncf %113 : vector<8x128xf32> to vector<8x128xbf16>
    %c0_36 = arith.constant 0 : index
    %c0_37 = arith.constant 0 : index
    %116 = vector.load %arg3[%c0_36, %c0_37] : memref<128x512xbf16, #tpu.memory_space<vmem>>, vector<128x512xbf16>
    %cst_38 = arith.constant dense<0.000000e+00> : vector<8x512xf32>
    %117 = tpu.matmul %115, %116, %cst_38 {dimension_numbers = #tpu.dot_dimension_numbers<[1], [0], [0], [1], [0, 0, 1, 1], [], []>} : vector<8x128xbf16>, vector<128x512xbf16>, vector<8x512xf32> -> vector<8x512xf32>
    %118 = arith.addf %114, %117 : vector<8x512xf32>
    %119 = vector.extract_strided_slice %118 {offsets = [0, 0], sizes = [8, 384], strides = [1, 1]} : vector<8x512xf32> to vector<8x384xf32>
    %120 = arith.negf %119 : vector<8x384xf32>
    %121 = math.exp %120 : vector<8x384xf32>
    %cst_39 = arith.constant 1.000000e+00 : f32
    %122 = vector.broadcast %cst_39 : f32 to vector<8x384xf32>
    %123 = arith.addf %122, %121 : vector<8x384xf32>
    %124 = arith.divf %122, %123 : vector<8x384xf32>
    %125 = vector.extract_strided_slice %118 {offsets = [0, 384], sizes = [8, 128], strides = [1, 1]} : vector<8x512xf32> to vector<8x128xf32>
    %126 = math.tanh %125 : vector<8x128xf32>
    %127 = vector.extract_strided_slice %124 {offsets = [0, 0], sizes = [8, 128], strides = [1, 1]} : vector<8x384xf32> to vector<8x128xf32>
    %128 = vector.extract_strided_slice %124 {offsets = [0, 128], sizes = [8, 128], strides = [1, 1]} : vector<8x384xf32> to vector<8x128xf32>
    %129 = vector.extract_strided_slice %124 {offsets = [0, 256], sizes = [8, 128], strides = [1, 1]} : vector<8x384xf32> to vector<8x128xf32>
    %130 = arith.mulf %128, %111 : vector<8x128xf32>
    %131 = arith.mulf %127, %126 : vector<8x128xf32>
    %132 = arith.addf %130, %131 : vector<8x128xf32>
    %133 = math.tanh %132 : vector<8x128xf32>
    %134 = arith.mulf %129, %133 : vector<8x128xf32>
    %c48 = arith.constant 48 : index
    %c0_40 = arith.constant 0 : index
    %135 = vector.load %arg8[%c48, %c0_40] : memref<64x512xf32, #tpu.memory_space<vmem>>, vector<8x512xf32>
    %136 = arith.truncf %134 : vector<8x128xf32> to vector<8x128xbf16>
    %c0_41 = arith.constant 0 : index
    %c0_42 = arith.constant 0 : index
    %137 = vector.load %arg3[%c0_41, %c0_42] : memref<128x512xbf16, #tpu.memory_space<vmem>>, vector<128x512xbf16>
    %cst_43 = arith.constant dense<0.000000e+00> : vector<8x512xf32>
    %138 = tpu.matmul %136, %137, %cst_43 {dimension_numbers = #tpu.dot_dimension_numbers<[1], [0], [0], [1], [0, 0, 1, 1], [], []>} : vector<8x128xbf16>, vector<128x512xbf16>, vector<8x512xf32> -> vector<8x512xf32>
    %139 = arith.addf %135, %138 : vector<8x512xf32>
    %140 = vector.extract_strided_slice %139 {offsets = [0, 0], sizes = [8, 384], strides = [1, 1]} : vector<8x512xf32> to vector<8x384xf32>
    %141 = arith.negf %140 : vector<8x384xf32>
    %142 = math.exp %141 : vector<8x384xf32>
    %cst_44 = arith.constant 1.000000e+00 : f32
    %143 = vector.broadcast %cst_44 : f32 to vector<8x384xf32>
    %144 = arith.addf %143, %142 : vector<8x384xf32>
    %145 = arith.divf %143, %144 : vector<8x384xf32>
    %146 = vector.extract_strided_slice %139 {offsets = [0, 384], sizes = [8, 128], strides = [1, 1]} : vector<8x512xf32> to vector<8x128xf32>
    %147 = math.tanh %146 : vector<8x128xf32>
    %148 = vector.extract_strided_slice %145 {offsets = [0, 0], sizes = [8, 128], strides = [1, 1]} : vector<8x384xf32> to vector<8x128xf32>
    %149 = vector.extract_strided_slice %145 {offsets = [0, 128], sizes = [8, 128], strides = [1, 1]} : vector<8x384xf32> to vector<8x128xf32>
    %150 = vector.extract_strided_slice %145 {offsets = [0, 256], sizes = [8, 128], strides = [1, 1]} : vector<8x384xf32> to vector<8x128xf32>
    %151 = arith.mulf %149, %132 : vector<8x128xf32>
    %152 = arith.mulf %148, %147 : vector<8x128xf32>
    %153 = arith.addf %151, %152 : vector<8x128xf32>
    %154 = math.tanh %153 : vector<8x128xf32>
    %155 = arith.mulf %150, %154 : vector<8x128xf32>
    %c56 = arith.constant 56 : index
    %c0_45 = arith.constant 0 : index
    %156 = vector.load %arg8[%c56, %c0_45] : memref<64x512xf32, #tpu.memory_space<vmem>>, vector<8x512xf32>
    %157 = arith.truncf %155 : vector<8x128xf32> to vector<8x128xbf16>
    %c0_46 = arith.constant 0 : index
    %c0_47 = arith.constant 0 : index
    %158 = vector.load %arg3[%c0_46, %c0_47] : memref<128x512xbf16, #tpu.memory_space<vmem>>, vector<128x512xbf16>
    %cst_48 = arith.constant dense<0.000000e+00> : vector<8x512xf32>
    %159 = tpu.matmul %157, %158, %cst_48 {dimension_numbers = #tpu.dot_dimension_numbers<[1], [0], [0], [1], [0, 0, 1, 1], [], []>} : vector<8x128xbf16>, vector<128x512xbf16>, vector<8x512xf32> -> vector<8x512xf32>
    %160 = arith.addf %156, %159 : vector<8x512xf32>
    %161 = vector.extract_strided_slice %160 {offsets = [0, 0], sizes = [8, 384], strides = [1, 1]} : vector<8x512xf32> to vector<8x384xf32>
    %162 = arith.negf %161 : vector<8x384xf32>
    %163 = math.exp %162 : vector<8x384xf32>
    %cst_49 = arith.constant 1.000000e+00 : f32
    %164 = vector.broadcast %cst_49 : f32 to vector<8x384xf32>
    %165 = arith.addf %164, %163 : vector<8x384xf32>
    %166 = arith.divf %164, %165 : vector<8x384xf32>
    %167 = vector.extract_strided_slice %160 {offsets = [0, 384], sizes = [8, 128], strides = [1, 1]} : vector<8x512xf32> to vector<8x128xf32>
    %168 = math.tanh %167 : vector<8x128xf32>
    %169 = vector.extract_strided_slice %166 {offsets = [0, 0], sizes = [8, 128], strides = [1, 1]} : vector<8x384xf32> to vector<8x128xf32>
    %170 = vector.extract_strided_slice %166 {offsets = [0, 128], sizes = [8, 128], strides = [1, 1]} : vector<8x384xf32> to vector<8x128xf32>
    %171 = vector.extract_strided_slice %166 {offsets = [0, 256], sizes = [8, 128], strides = [1, 1]} : vector<8x384xf32> to vector<8x128xf32>
    %172 = arith.mulf %170, %153 : vector<8x128xf32>
    %173 = arith.mulf %169, %168 : vector<8x128xf32>
    %174 = arith.addf %172, %173 : vector<8x128xf32>
    %175 = math.tanh %174 : vector<8x128xf32>
    %176 = arith.mulf %171, %175 : vector<8x128xf32>
    %177 = arith.truncf %176 : vector<8x128xf32> to vector<8x128xbf16>
    %c0_50 = arith.constant 0 : index
    %c0_51 = arith.constant 0 : index
    %178 = vector.load %arg5[%c0_50, %c0_51] : memref<128x128xbf16, #tpu.memory_space<vmem>>, vector<128x128xbf16>
    %cst_52 = arith.constant dense<0.000000e+00> : vector<8x128xf32>
    %179 = tpu.matmul %177, %178, %cst_52 {dimension_numbers = #tpu.dot_dimension_numbers<[1], [0], [0], [1], [0, 0, 1, 1], [], []>} : vector<8x128xbf16>, vector<128x128xbf16>, vector<8x128xf32> -> vector<8x128xf32>
    %c0_53 = arith.constant 0 : index
    %c0_54 = arith.constant 0 : index
    %180 = vector.load %arg6[%c0_53, %c0_54] : memref<1x128xf32, #tpu.memory_space<vmem>>, vector<1x128xf32>
    %181 = vector.broadcast %180 : vector<1x128xf32> to vector<8x128xf32>
    %182 = arith.addf %179, %181 : vector<8x128xf32>
    %c0_55 = arith.constant 0 : index
    %c0_56 = arith.constant 0 : index
    %183 = vector.load %arg7[%c0_55, %c0_56] : memref<8x128xf32, #tpu.memory_space<vmem>>, vector<8x128xf32>
    tpu.vector_store %arg7[%c0_55, %c0_56], %182 {strides = array<i32>} : memref<8x128xf32, #tpu.memory_space<vmem>>, vector<8x128xf32>,
    return
  }
  func.func @transform_0(%arg0: i32) -> (i32, i32) {
    %c0_i32 = arith.constant 0 : i32
    %c0_i32_0 = arith.constant 0 : i32
    return %arg0, %c0_i32 : i32, i32
  }
  func.func @transform_1(%arg0: i32) -> (i32, i32) {
    %c0_i32 = arith.constant 0 : i32
    %c0_i32_0 = arith.constant 0 : i32
    %c0_i32_1 = arith.constant 0 : i32
    return %c0_i32, %c0_i32_0 : i32, i32
  }
  func.func @transform_2(%arg0: i32) -> (i32, i32) {
    %c0_i32 = arith.constant 0 : i32
    %c0_i32_0 = arith.constant 0 : i32
    %c0_i32_1 = arith.constant 0 : i32
    return %c0_i32, %c0_i32_0 : i32, i32
  }
  func.func @transform_3(%arg0: i32) -> (i32, i32) {
    %c0_i32 = arith.constant 0 : i32
    %c0_i32_0 = arith.constant 0 : i32
    %c0_i32_1 = arith.constant 0 : i32
    return %c0_i32, %c0_i32_0 : i32, i32
  }
  func.func @transform_4(%arg0: i32) -> (i32, i32) {
    %c0_i32 = arith.constant 0 : i32
    %c0_i32_0 = arith.constant 0 : i32
    %c0_i32_1 = arith.constant 0 : i32
    return %c0_i32, %c0_i32_0 : i32, i32
  }
  func.func @transform_5(%arg0: i32) -> (i32, i32) {
    %c0_i32 = arith.constant 0 : i32
    %c0_i32_0 = arith.constant 0 : i32
    %c0_i32_1 = arith.constant 0 : i32
    return %c0_i32, %c0_i32_0 : i32, i32
  }
  func.func @transform_6(%arg0: i32) -> (i32, i32) {
    %c0_i32 = arith.constant 0 : i32
    %c0_i32_0 = arith.constant 0 : i32
    return %arg0, %c0_i32 : i32, i32
  }
}

</mosaic_0001>

<llo_original>
// kernel: rnn_forward.1
$region0: #{rnn_forward.1}
  #allocation0 [shape = 'u32[]', space=smem, size = 0x4, offset = 0x4, fixed_abs, tag = 'smem constant byte address 0x4 - core index']
  #allocation1 [shape = 'u32[72,128]{1,0:T(1,128)}', space=vmem, size = 0x9000, scoped, tag = 'internal scratch']
  #allocation2 [shape = 'f32[64,512]{1,0:T(8,128)}', space=vmem, size = 0x20000, scoped, tag = 'scratch operand']
  %s0 = inlined_call_operand.vmem [shape: bf16[64,32], index: 0, kind: input, shape index: {}]
  %s1 = inlined_call_operand.vmem [shape: bf16[32,512], index: 1, kind: input, shape index: {}]
  %s2 = inlined_call_operand.vmem [shape: bf16[128,512], index: 2, kind: input, shape index: {}]
  %s3 = inlined_call_operand.vmem [shape: f32[1,512], index: 3, kind: input, shape index: {}]
  %s4 = inlined_call_operand.vmem [shape: bf16[128,128], index: 4, kind: input, shape index: {}]
  %s5 = inlined_call_operand.vmem [shape: f32[1,128], index: 5, kind: input, shape index: {}]
  %s6 = inlined_call_operand.vmem [shape: f32[8,128], index: 6, kind: output, shape index: {}]
  %s7 = sld [smem:[#allocation0]]
  $region34: #{rnn_forward.1} parent=0
    _
  %s9 = ssub.s32 1, %s7
  %s10 = scalar_select 0, %s9, %s7
  // Predicated region
  $region2: #{rnn_forward.1} parent=0 // pred_check
    _
  $region3: #{rnn_forward.1} parent=0 // pred_check_branch
    %12 = sbr.rel (0) target = $region5
  $region4: #{rnn_forward.1} parent=0 // pred_region
    _
  $region5: #{rnn_forward.1} parent=0 // pred_fallthru
    _
  // Predicated region
  $region6: #{rnn_forward.1} parent=0 // pred_check
    _
  $region7: #{rnn_forward.1} parent=0 // pred_check_branch
    %14 = sbr.rel (0) target = $region9
  $region8: #{rnn_forward.1} parent=0 // pred_region
    _
  $region9: #{rnn_forward.1} parent=0 // pred_fallthru
    _
  // Predicated region
  $region10: #{rnn_forward.1} parent=0 // pred_check
    _
  $region11: #{rnn_forward.1} parent=0 // pred_check_branch
    %16 = sbr.rel (0) target = $region13
  $region12: #{rnn_forward.1} parent=0 // pred_region
    _
  $region13: #{rnn_forward.1} parent=0 // pred_fallthru
    _
  // Predicated region
  $region14: #{rnn_forward.1} parent=0 // pred_check
    _
  $region15: #{rnn_forward.1} parent=0 // pred_check_branch
    %18 = sbr.rel (0) target = $region17
  $region16: #{rnn_forward.1} parent=0 // pred_region
    _
  $region17: #{rnn_forward.1} parent=0 // pred_fallthru
    _
  // Predicated region
  $region18: #{rnn_forward.1} parent=0 // pred_check
    _
  $region19: #{rnn_forward.1} parent=0 // pred_check_branch
    %20 = sbr.rel (0) target = $region21
  $region20: #{rnn_forward.1} parent=0 // pred_region
    _
  $region21: #{rnn_forward.1} parent=0 // pred_fallthru
    _
  // Predicated region
  $region22: #{rnn_forward.1} parent=0 // pred_check
    _
  $region23: #{rnn_forward.1} parent=0 // pred_check_branch
    %22 = sbr.rel (0) target = $region25
  $region24: #{rnn_forward.1} parent=0 // pred_region
    _
  $region25: #{rnn_forward.1} parent=0 // pred_fallthru
    _
  %v24 = vld [vmem:[%s0] sm:$0xf]
  %v25 = vld [vmem:[%s0 + $0x4] sm:$0xf]
  %v26 = vld [vmem:[%s0 + $0x8] sm:$0xf]
  %v27 = vld [vmem:[%s0 + $0xc] sm:$0xf]
  %v28 = vld [vmem:[%s0 + $0x10] sm:$0xf]
  %v29 = vld [vmem:[%s0 + $0x14] sm:$0xf]
  %v30 = vld [vmem:[%s0 + $0x18] sm:$0xf]
  %v31 = vld [vmem:[%s0 + $0x1c] sm:$0xf]
  %v32 = vld [vmem:[%s1] sm:$0xff]
  %v33 = vld [vmem:[%s1 + $0x8] sm:$0xff]
  %v34 = vld [vmem:[%s1 + $0x10] sm:$0xff]
  %v35 = vld [vmem:[%s1 + $0x18] sm:$0xff]
  %v36 = vld [vmem:[%s1 + $0x20] sm:$0xff]
  %v37 = vld [vmem:[%s1 + $0x28] sm:$0xff]
  %v38 = vld [vmem:[%s1 + $0x30] sm:$0xff]
  %v39 = vld [vmem:[%s1 + $0x38] sm:$0xff]
  %v40 = vld [vmem:[%s3] sm:$0xf]
  %v42 = vperm.slane %v40, 0
  %v43 = vperm.slane %v40, 1
  %v44 = vperm.slane %v40, 2
  %v45 = vperm.slane %v40, 3
  %v58 = vunpack.c.l.b16 %v24
  %v59 = vunpack.c.l.b16 %v25
  %v60 = vunpack.c.l.b16 %v26
  %v61 = vunpack.c.l.b16 %v27
  %v62 = vunpack.c.l.b16 %v28
  %v63 = vunpack.c.l.b16 %v29
  %v64 = vunpack.c.l.b16 %v30
  %v65 = vunpack.c.l.b16 %v31
  %v66 = vpack.c.b16 %v59, %v58
  %v67 = vpack.c.b16 %v61, %v60
  %v68 = vpack.c.b16 %v63, %v62
  %v69 = vpack.c.b16 %v65, %v64
  %v78 = vunpack.c.l.b16 %v32
  %v79 = vunpack.c.h.b16 %v32
  %v80 = vunpack.c.l.b16 %v33
  %v81 = vunpack.c.h.b16 %v33
  %v82 = vunpack.c.l.b16 %v34
  %v83 = vunpack.c.h.b16 %v34
  %v84 = vunpack.c.l.b16 %v35
  %v85 = vunpack.c.h.b16 %v35
  %v86 = vunpack.c.l.b16 %v36
  %v87 = vunpack.c.h.b16 %v36
  %v88 = vunpack.c.l.b16 %v37
  %v89 = vunpack.c.h.b16 %v37
  %v90 = vunpack.c.l.b16 %v38
  %v91 = vunpack.c.h.b16 %v38
  %v92 = vunpack.c.l.b16 %v39
  %v93 = vunpack.c.h.b16 %v39
  %v94 = vpack.c.b16 %v82, %v78
  %v95 = vpack.c.b16 %v83, %v79
  %v96 = vpack.c.b16 %v84, %v80
  %v97 = vpack.c.b16 %v85, %v81
  %v98 = vpack.c.b16 %v90, %v86
  %v99 = vpack.c.b16 %v91, %v87
  %v100 = vpack.c.b16 %v92, %v88
  %v101 = vpack.c.b16 %v93, %v89
  %vm110 = vcmask 261120
  %v112 = vsel %vm110, %v66, 0
  %v115 = vsel %vm110, %v67, 0
  %v118 = vsel %vm110, %v68, 0
  %v121 = vsel %vm110, %v69, 0
  %123 = vmatpush.bf16.msra.mxu0 0
  %124 = vmatpush.bf16.msra.mxu0 0
  %125 = vmatpush.bf16.msra.mxu0 0
  %126 = vmatpush.bf16.msra.mxu0 0
  %127 = vmatpush.bf16.msra.mxu0 0
  %128 = vmatpush.bf16.msra.mxu0 0
  %129 = vmatpush.bf16.msra.mxu0 %v98
  %130 = vmatpush.bf16.msra.mxu0 %v94
  %131 = vmatmul.bf16.gmra.mxu0 %v112
  %v132 = vpop.f32.mrf.mxu0
  %v133 = vadd.f32 %v42, %v132
  %v134 = vpop.f32.mrf.mxu0
  %v135 = vadd.f32 %v42, %v134
  %136 = vmatmul.bf16.gmra.mxu0 %v115
  %v137 = vpop.f32.mrf.mxu0
  %v138 = vadd.f32 %v42, %v137
  %v139 = vpop.f32.mrf.mxu0
  %v140 = vadd.f32 %v42, %v139
  %141 = vmatmul.bf16.gmra.mxu0 %v118
  %v142 = vpop.f32.mrf.mxu0
  %v143 = vadd.f32 %v42, %v142
  %v144 = vpop.f32.mrf.mxu0
  %v145 = vadd.f32 %v42, %v144
  %146 = vmatmul.bf16.gmra.mxu0 %v121
  %v147 = vpop.f32.mrf.mxu0
  %v148 = vadd.f32 %v42, %v147
  %v149 = vpop.f32.mrf.mxu0
  %v150 = vadd.f32 %v42, %v149
  %151 = vdwg.mxu0
  %152 = vmatpush.bf16.msra.mxu0 0
  %153 = vmatpush.bf16.msra.mxu0 0
  %154 = vmatpush.bf16.msra.mxu0 0
  %155 = vmatpush.bf16.msra.mxu0 0
  %156 = vmatpush.bf16.msra.mxu0 0
  %157 = vmatpush.bf16.msra.mxu0 0
  %158 = vmatpush.bf16.msra.mxu0 %v99
  %159 = vmatpush.bf16.msra.mxu0 %v95
  %160 = vmatmul.bf16.gmra.mxu0 %v112
  %v161 = vpop.f32.mrf.mxu0
  %v162 = vadd.f32 %v43, %v161
  %v163 = vpop.f32.mrf.mxu0
  %v164 = vadd.f32 %v43, %v163
  %165 = vmatmul.bf16.gmra.mxu0 %v115
  %v166 = vpop.f32.mrf.mxu0
  %v167 = vadd.f32 %v43, %v166
  %v168 = vpop.f32.mrf.mxu0
  %v169 = vadd.f32 %v43, %v168
  %170 = vmatmul.bf16.gmra.mxu0 %v118
  %v171 = vpop.f32.mrf.mxu0
  %v172 = vadd.f32 %v43, %v171
  %v173 = vpop.f32.mrf.mxu0
  %v174 = vadd.f32 %v43, %v173
  %175 = vmatmul.bf16.gmra.mxu0 %v121
  %v176 = vpop.f32.mrf.mxu0
  %v177 = vadd.f32 %v43, %v176
  %v178 = vpop.f32.mrf.mxu0
  %v179 = vadd.f32 %v43, %v178
  %180 = vdwg.mxu0
  %181 = vmatpush.bf16.msra.mxu0 0
  %182 = vmatpush.bf16.msra.mxu0 0
  %183 = vmatpush.bf16.msra.mxu0 0
  %184 = vmatpush.bf16.msra.mxu0 0
  %185 = vmatpush.bf16.msra.mxu0 0
  %186 = vmatpush.bf16.msra.mxu0 0
  %187 = vmatpush.bf16.msra.mxu0 %v100
  %188 = vmatpush.bf16.msra.mxu0 %v96
  %189 = vmatmul.bf16.gmra.mxu0 %v112
  %v190 = vpop.f32.mrf.mxu0
  %v191 = vadd.f32 %v44, %v190
  %v192 = vpop.f32.mrf.mxu0
  %v193 = vadd.f32 %v44, %v192
  %194 = vmatmul.bf16.gmra.mxu0 %v115
  %v195 = vpop.f32.mrf.mxu0
  %v196 = vadd.f32 %v44, %v195
  %v197 = vpop.f32.mrf.mxu0
  %v198 = vadd.f32 %v44, %v197
  %199 = vmatmul.bf16.gmra.mxu0 %v118
  %v200 = vpop.f32.mrf.mxu0
  %v201 = vadd.f32 %v44, %v200
  %v202 = vpop.f32.mrf.mxu0
  %v203 = vadd.f32 %v44, %v202
  %204 = vmatmul.bf16.gmra.mxu0 %v121
  %v205 = vpop.f32.mrf.mxu0
  %v206 = vadd.f32 %v44, %v205
  %v207 = vpop.f32.mrf.mxu0
  %v208 = vadd.f32 %v44, %v207
  %209 = vdwg.mxu0
  %210 = vmatpush.bf16.msra.mxu0 0
  %211 = vmatpush.bf16.msra.mxu0 0
  %212 = vmatpush.bf16.msra.mxu0 0
  %213 = vmatpush.bf16.msra.mxu0 0
  %214 = vmatpush.bf16.msra.mxu0 0
  %215 = vmatpush.bf16.msra.mxu0 0
  %216 = vmatpush.bf16.msra.mxu0 %v101
  %217 = vmatpush.bf16.msra.mxu0 %v97
  %218 = vmatmul.bf16.gmra.mxu0 %v112
  %v219 = vpop.f32.mrf.mxu0
  %v220 = vadd.f32 %v45, %v219
  %v221 = vpop.f32.mrf.mxu0
  %v222 = vadd.f32 %v45, %v221
  %223 = vmatmul.bf16.gmra.mxu0 %v115
  %v224 = vpop.f32.mrf.mxu0
  %v225 = vadd.f32 %v45, %v224
  %v226 = vpop.f32.mrf.mxu0
  %v227 = vadd.f32 %v45, %v226
  %228 = vmatmul.bf16.gmra.mxu0 %v118
  %v229 = vpop.f32.mrf.mxu0
  %v230 = vadd.f32 %v45, %v229
  %v231 = vpop.f32.mrf.mxu0
  %v232 = vadd.f32 %v45, %v231
  %233 = vmatmul.bf16.gmra.mxu0 %v121
  %v234 = vpop.f32.mrf.mxu0
  %v235 = vadd.f32 %v45, %v234
  %v236 = vpop.f32.mrf.mxu0
  %v237 = vadd.f32 %v45, %v236
  %238 = vdwg.mxu0
  %239 = vst [vmem:[#allocation2] sm:$0xff] %v133
  %240 = vst [vmem:[#allocation2 + $0x8] sm:$0xff] %v162
  %241 = vst [vmem:[#allocation2 + $0x10] sm:$0xff] %v191
  %242 = vst [vmem:[#allocation2 + $0x18] sm:$0xff] %v220
  %243 = vst [vmem:[#allocation2 + $0x20] sm:$0xff] %v135
  %244 = vst [vmem:[#allocation2 + $0x28] sm:$0xff] %v164
  %245 = vst [vmem:[#allocation2 + $0x30] sm:$0xff] %v193
  %246 = vst [vmem:[#allocation2 + $0x38] sm:$0xff] %v222
  %247 = vst [vmem:[#allocation2 + $0x40] sm:$0xff] %v138
  %248 = vst [vmem:[#allocation2 + $0x48] sm:$0xff] %v167
  %249 = vst [vmem:[#allocation2 + $0x50] sm:$0xff] %v196
  %250 = vst [vmem:[#allocation2 + $0x58] sm:$0xff] %v225
  %251 = vst [vmem:[#allocation2 + $0x60] sm:$0xff] %v140
  %252 = vst [vmem:[#allocation2 + $0x68] sm:$0xff] %v169
  %253 = vst [vmem:[#allocation2 + $0x70] sm:$0xff] %v198
  %254 = vst [vmem:[#allocation2 + $0x78] sm:$0xff] %v227
  %255 = vst [vmem:[#allocation2 + $0x80] sm:$0xff] %v143
  %256 = vst [vmem:[#allocation2 + $0x88] sm:$0xff] %v172
  %257 = vst [vmem:[#allocation2 + $0x90] sm:$0xff] %v201
  %258 = vst [vmem:[#allocation2 + $0x98] sm:$0xff] %v230
  %259 = vst [vmem:[#allocation2 + $0xa0] sm:$0xff] %v145
  %260 = vst [vmem:[#allocation2 + $0xa8] sm:$0xff] %v174
  %261 = vst [vmem:[#allocation2 + $0xb0] sm:$0xff] %v203
  %262 = vst [vmem:[#allocation2 + $0xb8] sm:$0xff] %v232
  %263 = vst [vmem:[#allocation2 + $0xc0] sm:$0xff] %v148
  %264 = vst [vmem:[#allocation2 + $0xc8] sm:$0xff] %v177
  %265 = vst [vmem:[#allocation2 + $0xd0] sm:$0xff] %v206
  %266 = vst [vmem:[#allocation2 + $0xd8] sm:$0xff] %v235
  %267 = vst [vmem:[#allocation2 + $0xe0] sm:$0xff] %v150
  %268 = vst [vmem:[#allocation2 + $0xe8] sm:$0xff] %v179
  %269 = vst [vmem:[#allocation2 + $0xf0] sm:$0xff] %v208
  %270 = vst [vmem:[#allocation2 + $0xf8] sm:$0xff] %v237
  %v271 = vld [vmem:[#allocation2] sm:$0xff]
  %v272 = vld [vmem:[#allocation2 + $0x8] sm:$0xff]
  %v273 = vld [vmem:[#allocation2 + $0x10] sm:$0xff]
  %v274 = vld [vmem:[#allocation2 + $0x18] sm:$0xff]
  %v275 = vld [vmem:[%s2] sm:$0xff]
  %v276 = vld [vmem:[%s2 + $0x8] sm:$0xff]
  %v277 = vld [vmem:[%s2 + $0x10] sm:$0xff]
  %v278 = vld [vmem:[%s2 + $0x18] sm:$0xff]
  %v279 = vld [vmem:[%s2 + $0x20] sm:$0xff]
  %v280 = vld [vmem:[%s2 + $0x28] sm:$0xff]
  %v281 = vld [vmem:[%s2 + $0x30] sm:$0xff]
  %v282 = vld [vmem:[%s2 + $0x38] sm:$0xff]
  %v283 = vld [vmem:[%s2 + $0x40] sm:$0xff]
  %v284 = vld [vmem:[%s2 + $0x48] sm:$0xff]
  %v285 = vld [vmem:[%s2 + $0x50] sm:$0xff]
  %v286 = vld [vmem:[%s2 + $0x58] sm:$0xff]
  %v287 = vld [vmem:[%s2 + $0x60] sm:$0xff]
  %v288 = vld [vmem:[%s2 + $0x68] sm:$0xff]
  %v289 = vld [vmem:[%s2 + $0x70] sm:$0xff]
  %v290 = vld [vmem:[%s2 + $0x78] sm:$0xff]
  %v291 = vld [vmem:[%s2 + $0x80] sm:$0xff]
  %v292 = vld [vmem:[%s2 + $0x88] sm:$0xff]
  %v293 = vld [vmem:[%s2 + $0x90] sm:$0xff]
  %v294 = vld [vmem:[%s2 + $0x98] sm:$0xff]
  %v295 = vld [vmem:[%s2 + $0xa0] sm:$0xff]
  %v296 = vld [vmem:[%s2 + $0xa8] sm:$0xff]
  %v297 = vld [vmem:[%s2 + $0xb0] sm:$0xff]
  %v298 = vld [vmem:[%s2 + $0xb8] sm:$0xff]
  %v299 = vld [vmem:[%s2 + $0xc0] sm:$0xff]
  %v300 = vld [vmem:[%s2 + $0xc8] sm:$0xff]
  %v301 = vld [vmem:[%s2 + $0xd0] sm:$0xff]
  %v302 = vld [vmem:[%s2 + $0xd8] sm:$0xff]
  %v303 = vld [vmem:[%s2 + $0xe0] sm:$0xff]
  %v304 = vld [vmem:[%s2 + $0xe8] sm:$0xff]
  %v305 = vld [vmem:[%s2 + $0xf0] sm:$0xff]
  %v306 = vld [vmem:[%s2 + $0xf8] sm:$0xff]
  %v339 = vunpack.c.l.b16 %v275
  %v340 = vunpack.c.h.b16 %v275
  %v341 = vunpack.c.l.b16 %v276
  %v342 = vunpack.c.h.b16 %v276
  %v343 = vunpack.c.l.b16 %v277
  %v344 = vunpack.c.h.b16 %v277
  %v345 = vunpack.c.l.b16 %v278
  %v346 = vunpack.c.h.b16 %v278
  %v347 = vunpack.c.l.b16 %v279
  %v348 = vunpack.c.h.b16 %v279
  %v349 = vunpack.c.l.b16 %v280
  %v350 = vunpack.c.h.b16 %v280
  %v351 = vunpack.c.l.b16 %v281
  %v352 = vunpack.c.h.b16 %v281
  %v353 = vunpack.c.l.b16 %v282
  %v354 = vunpack.c.h.b16 %v282
  %v355 = vunpack.c.l.b16 %v283
  %v356 = vunpack.c.h.b16 %v283
  %v357 = vunpack.c.l.b16 %v284
  %v358 = vunpack.c.h.b16 %v284
  %v359 = vunpack.c.l.b16 %v285
  %v360 = vunpack.c.h.b16 %v285
  %v361 = vunpack.c.l.b16 %v286
  %v362 = vunpack.c.h.b16 %v286
  %v363 = vunpack.c.l.b16 %v287
  %v364 = vunpack.c.h.b16 %v287
  %v365 = vunpack.c.l.b16 %v288
  %v366 = vunpack.c.h.b16 %v288
  %v367 = vunpack.c.l.b16 %v289
  %v368 = vunpack.c.h.b16 %v289
  %v369 = vunpack.c.l.b16 %v290
  %v370 = vunpack.c.h.b16 %v290
  %v371 = vunpack.c.l.b16 %v291
  %v372 = vunpack.c.h.b16 %v291
  %v373 = vunpack.c.l.b16 %v292
  %v374 = vunpack.c.h.b16 %v292
  %v375 = vunpack.c.l.b16 %v293
  %v376 = vunpack.c.h.b16 %v293
  %v377 = vunpack.c.l.b16 %v294
  %v378 = vunpack.c.h.b16 %v294
  %v379 = vunpack.c.l.b16 %v295
  %v380 = vunpack.c.h.b16 %v295
  %v381 = vunpack.c.l.b16 %v296
  %v382 = vunpack.c.h.b16 %v296
  %v383 = vunpack.c.l.b16 %v297
  %v384 = vunpack.c.h.b16 %v297
  %v385 = vunpack.c.l.b16 %v298
  %v386 = vunpack.c.h.b16 %v298
  %v387 = vunpack.c.l.b16 %v299
  %v388 = vunpack.c.h.b16 %v299
  %v389 = vunpack.c.l.b16 %v300
  %v390 = vunpack.c.h.b16 %v300
  %v391 = vunpack.c.l.b16 %v301
  %v392 = vunpack.c.h.b16 %v301
  %v393 = vunpack.c.l.b16 %v302
  %v394 = vunpack.c.h.b16 %v302
  %v395 = vunpack.c.l.b16 %v303
  %v396 = vunpack.c.h.b16 %v303
  %v397 = vunpack.c.l.b16 %v304
  %v398 = vunpack.c.h.b16 %v304
  %v399 = vunpack.c.l.b16 %v305
  %v400 = vunpack.c.h.b16 %v305
  %v401 = vunpack.c.l.b16 %v306
  %v402 = vunpack.c.h.b16 %v306
  %v403 = vpack.c.b16 %v343, %v339
  %v404 = vpack.c.b16 %v344, %v340
  %v405 = vpack.c.b16 %v345, %v341
  %v406 = vpack.c.b16 %v346, %v342
  %v407 = vpack.c.b16 %v351, %v347
  %v408 = vpack.c.b16 %v352, %v348
  %v409 = vpack.c.b16 %v353, %v349
  %v410 = vpack.c.b16 %v354, %v350
  %v411 = vpack.c.b16 %v359, %v355
  %v412 = vpack.c.b16 %v360, %v356
  %v413 = vpack.c.b16 %v361, %v357
  %v414 = vpack.c.b16 %v362, %v358
  %v415 = vpack.c.b16 %v367, %v363
  %v416 = vpack.c.b16 %v368, %v364
  %v417 = vpack.c.b16 %v369, %v365
  %v418 = vpack.c.b16 %v370, %v366
  %v419 = vpack.c.b16 %v375, %v371
  %v420 = vpack.c.b16 %v376, %v372
  %v421 = vpack.c.b16 %v377, %v373
  %v422 = vpack.c.b16 %v378, %v374
  %v423 = vpack.c.b16 %v383, %v379
  %v424 = vpack.c.b16 %v384, %v380
  %v425 = vpack.c.b16 %v385, %v381
  %v426 = vpack.c.b16 %v386, %v382
  %v427 = vpack.c.b16 %v391, %v387
  %v428 = vpack.c.b16 %v392, %v388
  %v429 = vpack.c.b16 %v393, %v389
  %v430 = vpack.c.b16 %v394, %v390
  %v431 = vpack.c.b16 %v399, %v395
  %v432 = vpack.c.b16 %v400, %v396
  %v433 = vpack.c.b16 %v401, %v397
  %v434 = vpack.c.b16 %v402, %v398
  %467 = vmatpush.bf16.msra.mxu0 %v431
  %468 = vmatpush.bf16.msra.mxu0 %v427
  %469 = vmatpush.bf16.msra.mxu0 %v423
  %470 = vmatpush.bf16.msra.mxu0 %v419
  %471 = vmatpush.bf16.msra.mxu0 %v415
  %472 = vmatpush.bf16.msra.mxu0 %v411
  %473 = vmatpush.bf16.msra.mxu0 %v407
  %474 = vmatpush.bf16.msra.mxu0 %v403
  %475 = vmatmul.bf16.gmra.mxu0 0
  %v476 = vpop.f32.mrf.mxu0
  %v477 = vadd.f32 0.0, %v476
  %v478 = vpop.f32.mrf.mxu0
  %479 = vdwg.mxu0
  %480 = vmatpush.bf16.msra.mxu0 %v432
  %481 = vmatpush.bf16.msra.mxu0 %v428
  %482 = vmatpush.bf16.msra.mxu0 %v424
  %483 = vmatpush.bf16.msra.mxu0 %v420
  %484 = vmatpush.bf16.msra.mxu0 %v416
  %485 = vmatpush.bf16.msra.mxu0 %v412
  %486 = vmatpush.bf16.msra.mxu0 %v408
  %487 = vmatpush.bf16.msra.mxu0 %v404
  %488 = vmatmul.bf16.gmra.mxu0 0
  %v489 = vpop.f32.mrf.mxu0
  %v490 = vadd.f32 0.0, %v489
  %v491 = vpop.f32.mrf.mxu0
  %492 = vdwg.mxu0
  %493 = vmatpush.bf16.msra.mxu0 %v433
  %494 = vmatpush.bf16.msra.mxu0 %v429
  %495 = vmatpush.bf16.msra.mxu0 %v425
  %496 = vmatpush.bf16.msra.mxu0 %v421
  %497 = vmatpush.bf16.msra.mxu0 %v417
  %498 = vmatpush.bf16.msra.mxu0 %v413
  %499 = vmatpush.bf16.msra.mxu0 %v409
  %500 = vmatpush.bf16.msra.mxu0 %v405
  %501 = vmatmul.bf16.gmra.mxu0 0
  %v502 = vpop.f32.mrf.mxu0
  %v503 = vadd.f32 0.0, %v502
  %v504 = vpop.f32.mrf.mxu0
  %505 = vdwg.mxu0
  %506 = vmatpush.bf16.msra.mxu0 %v434
  %507 = vmatpush.bf16.msra.mxu0 %v430
  %508 = vmatpush.bf16.msra.mxu0 %v426
  %509 = vmatpush.bf16.msra.mxu0 %v422
  %510 = vmatpush.bf16.msra.mxu0 %v418
  %511 = vmatpush.bf16.msra.mxu0 %v414
  %512 = vmatpush.bf16.msra.mxu0 %v410
  %513 = vmatpush.bf16.msra.mxu0 %v406
  %514 = vmatmul.bf16.gmra.mxu0 0
  %v515 = vpop.f32.mrf.mxu0
  %v516 = vadd.f32 0.0, %v515
  %v517 = vpop.f32.mrf.mxu0
  %518 = vdwg.mxu0
  %v519 = vadd.f32 %v271, %v477
  %v520 = vadd.f32 %v272, %v490
  %v521 = vadd.f32 %v273, %v503
  %v522 = vadd.f32 %v274, %v516
  %v523 = vxor.u32 %v519, 2147483648
  %v524 = vxor.u32 %v520, 2147483648
  %v525 = vxor.u32 %v521, 2147483648
  %v526 = vmul.f32 %v523, 1.442695
  %v527 = vpow.pop %v526
  %v528 = vmul.f32 %v524, 1.442695
  %v529 = vpow.pop %v528
  %v530 = vmul.f32 %v525, 1.442695
  %v531 = vpow.pop %v530
  %v532 = vadd.f32 %v527, 1.0
  %v533 = vadd.f32 %v529, 1.0
  %v534 = vadd.f32 %v531, 1.0
  %v535 = vrcp.pop %v532
  %v536 = vmul.f32 %v532, %v535
  %v537 = vsub.f32 1.0, %v536
  %v538 = vmul.f32 %v535, %v537
  %v539 = vadd.f32 %v535, %v538
  %vm540 = vweird.f32 %v532
  %vm541 = vweird.f32 %v535
  %vm542 = vmor %vm540, %vm541
  %v543 = vsel %vm542, %v535, %v539
  %v544 = vand.u32 2147483647, %v532
  %vm545 = vcmp.eq.f32.partialorder %v544, 8.507059e+37
  %v546 = vand.u32 %v532, 2147483648
  %v547 = vor.u32 1.1754944e-38, %v546
  %v548 = vsel %vm545, %v547, %v543
  %v549 = vmul.f32 1.0, %v548
  %v550 = vrcp.pop %v533
  %v551 = vmul.f32 %v533, %v550
  %v552 = vsub.f32 1.0, %v551
  %v553 = vmul.f32 %v550, %v552
  %v554 = vadd.f32 %v550, %v553
  %vm555 = vweird.f32 %v533
  %vm556 = vweird.f32 %v550
  %vm557 = vmor %vm555, %vm556
  %v558 = vsel %vm557, %v550, %v554
  %v559 = vand.u32 2147483647, %v533
  %vm560 = vcmp.eq.f32.partialorder %v559, 8.507059e+37
  %v561 = vand.u32 %v533, 2147483648
  %v562 = vor.u32 1.1754944e-38, %v561
  %v563 = vsel %vm560, %v562, %v558
  %v564 = vmul.f32 1.0, %v563
  %v565 = vrcp.pop %v534
  %v566 = vmul.f32 %v534, %v565
  %v567 = vsub.f32 1.0, %v566
  %v568 = vmul.f32 %v565, %v567
  %v569 = vadd.f32 %v565, %v568
  %vm570 = vweird.f32 %v534
  %vm571 = vweird.f32 %v565
  %vm572 = vmor %vm570, %vm571
  %v573 = vsel %vm572, %v565, %v569
  %v574 = vand.u32 2147483647, %v534
  %vm575 = vcmp.eq.f32.partialorder %v574, 8.507059e+37
  %v576 = vand.u32 %v534, 2147483648
  %v577 = vor.u32 1.1754944e-38, %v576
  %v578 = vsel %vm575, %v577, %v573
  %v579 = vmul.f32 1.0, %v578
  %v580 = vtanh.pop %v522
  %v581 = vmul.f32 %v564, 0.0
  %v582 = vmul.f32 %v549, %v580
  %v583 = vadd.f32 %v581, %v582
  %v584 = vtanh.pop %v583
  %v585 = vmul.f32 %v579, %v584
  %v586 = vld [vmem:[#allocation2 + $0x20] sm:$0xff]
  %v587 = vld [vmem:[#allocation2 + $0x28] sm:$0xff]
  %v588 = vld [vmem:[#allocation2 + $0x30] sm:$0xff]
  %v589 = vld [vmem:[#allocation2 + $0x38] sm:$0xff]
  %v590 = vpack.c.bf16 %v585, %v585
  %591 = vmatpush.bf16.msra.mxu0 %v431
  %592 = vmatpush.bf16.msra.mxu0 %v427
  %593 = vmatpush.bf16.msra.mxu0 %v423
  %594 = vmatpush.bf16.msra.mxu0 %v419
  %595 = vmatpush.bf16.msra.mxu0 %v415
  %596 = vmatpush.bf16.msra.mxu0 %v411
  %597 = vmatpush.bf16.msra.mxu0 %v407
  %598 = vmatpush.bf16.msra.mxu0 %v403
  %599 = vmatmul.bf16.gmra.mxu0 %v590
  %v600 = vpop.f32.mrf.mxu0
  %v601 = vadd.f32 0.0, %v600
  %v602 = vpop.f32.mrf.mxu0
  %603 = vdwg.mxu0
  %604 = vmatpush.bf16.msra.mxu0 %v432
  %605 = vmatpush.bf16.msra.mxu0 %v428
  %606 = vmatpush.bf16.msra.mxu0 %v424
  %607 = vmatpush.bf16.msra.mxu0 %v420
  %608 = vmatpush.bf16.msra.mxu0 %v416
  %609 = vmatpush.bf16.msra.mxu0 %v412
  %610 = vmatpush.bf16.msra.mxu0 %v408
  %611 = vmatpush.bf16.msra.mxu0 %v404
  %612 = vmatmul.bf16.gmra.mxu0 %v590
  %v613 = vpop.f32.mrf.mxu0
  %v614 = vadd.f32 0.0, %v613
  %v615 = vpop.f32.mrf.mxu0
  %616 = vdwg.mxu0
  %617 = vmatpush.bf16.msra.mxu0 %v433
  %618 = vmatpush.bf16.msra.mxu0 %v429
  %619 = vmatpush.bf16.msra.mxu0 %v425
  %620 = vmatpush.bf16.msra.mxu0 %v421
  %621 = vmatpush.bf16.msra.mxu0 %v417
  %622 = vmatpush.bf16.msra.mxu0 %v413
  %623 = vmatpush.bf16.msra.mxu0 %v409
  %624 = vmatpush.bf16.msra.mxu0 %v405
  %625 = vmatmul.bf16.gmra.mxu0 %v590
  %v626 = vpop.f32.mrf.mxu0
  %v627 = vadd.f32 0.0, %v626
  %v628 = vpop.f32.mrf.mxu0
  %629 = vdwg.mxu0
  %630 = vmatpush.bf16.msra.mxu0 %v434
  %631 = vmatpush.bf16.msra.mxu0 %v430
  %632 = vmatpush.bf16.msra.mxu0 %v426
  %633 = vmatpush.bf16.msra.mxu0 %v422
  %634 = vmatpush.bf16.msra.mxu0 %v418
  %635 = vmatpush.bf16.msra.mxu0 %v414
  %636 = vmatpush.bf16.msra.mxu0 %v410
  %637 = vmatpush.bf16.msra.mxu0 %v406
  %638 = vmatmul.bf16.gmra.mxu0 %v590
  %v639 = vpop.f32.mrf.mxu0
  %v640 = vadd.f32 0.0, %v639
  %v641 = vpop.f32.mrf.mxu0
  %642 = vdwg.mxu0
  %v643 = vadd.f32 %v586, %v601
  %v644 = vadd.f32 %v587, %v614
  %v645 = vadd.f32 %v588, %v627
  %v646 = vadd.f32 %v589, %v640
  %v647 = vxor.u32 %v643, 2147483648
  %v648 = vxor.u32 %v644, 2147483648
  %v649 = vxor.u32 %v645, 2147483648
  %v650 = vmul.f32 %v647, 1.442695
  %v651 = vpow.pop %v650
  %v652 = vmul.f32 %v648, 1.442695
  %v653 = vpow.pop %v652
  %v654 = vmul.f32 %v649, 1.442695
  %v655 = vpow.pop %v654
  %v656 = vadd.f32 %v651, 1.0
  %v657 = vadd.f32 %v653, 1.0
  %v658 = vadd.f32 %v655, 1.0
  %v659 = vrcp.pop %v656
  %v660 = vmul.f32 %v656, %v659
  %v661 = vsub.f32 1.0, %v660
  %v662 = vmul.f32 %v659, %v661
  %v663 = vadd.f32 %v659, %v662
  %vm664 = vweird.f32 %v656
  %vm665 = vweird.f32 %v659
  %vm666 = vmor %vm664, %vm665
  %v667 = vsel %vm666, %v659, %v663
  %v668 = vand.u32 2147483647, %v656
  %vm669 = vcmp.eq.f32.partialorder %v668, 8.507059e+37
  %v670 = vand.u32 %v656, 2147483648
  %v671 = vor.u32 1.1754944e-38, %v670
  %v672 = vsel %vm669, %v671, %v667
  %v673 = vmul.f32 1.0, %v672
  %v674 = vrcp.pop %v657
  %v675 = vmul.f32 %v657, %v674
  %v676 = vsub.f32 1.0, %v675
  %v677 = vmul.f32 %v674, %v676
  %v678 = vadd.f32 %v674, %v677
  %vm679 = vweird.f32 %v657
  %vm680 = vweird.f32 %v674
  %vm681 = vmor %vm679, %vm680
  %v682 = vsel %vm681, %v674, %v678
  %v683 = vand.u32 2147483647, %v657
  %vm684 = vcmp.eq.f32.partialorder %v683, 8.507059e+37
  %v685 = vand.u32 %v657, 2147483648
  %v686 = vor.u32 1.1754944e-38, %v685
  %v687 = vsel %vm684, %v686, %v682
  %v688 = vmul.f32 1.0, %v687
  %v689 = vrcp.pop %v658
  %v690 = vmul.f32 %v658, %v689
  %v691 = vsub.f32 1.0, %v690
  %v692 = vmul.f32 %v689, %v691
  %v693 = vadd.f32 %v689, %v692
  %vm694 = vweird.f32 %v658
  %vm695 = vweird.f32 %v689
  %vm696 = vmor %vm694, %vm695
  %v697 = vsel %vm696, %v689, %v693
  %v698 = vand.u32 2147483647, %v658
  %vm699 = vcmp.eq.f32.partialorder %v698, 8.507059e+37
  %v700 = vand.u32 %v658, 2147483648
  %v701 = vor.u32 1.1754944e-38, %v700
  %v702 = vsel %vm699, %v701, %v697
  %v703 = vmul.f32 1.0, %v702
  %v704 = vtanh.pop %v646
  %v705 = vmul.f32 %v688, %v583
  %v706 = vmul.f32 %v673, %v704
  %v707 = vadd.f32 %v705, %v706
  %v708 = vtanh.pop %v707
  %v709 = vmul.f32 %v703, %v708
  %v710 = vld [vmem:[#allocation2 + $0x40] sm:$0xff]
  %v711 = vld [vmem:[#allocation2 + $0x48] sm:$0xff]
  %v712 = vld [vmem:[#allocation2 + $0x50] sm:$0xff]
  %v713 = vld [vmem:[#allocation2 + $0x58] sm:$0xff]
  %v714 = vpack.c.bf16 %v709, %v709
  %715 = vmatpush.bf16.msra.mxu0 %v431
  %716 = vmatpush.bf16.msra.mxu0 %v427
  %717 = vmatpush.bf16.msra.mxu0 %v423
  %718 = vmatpush.bf16.msra.mxu0 %v419
  %719 = vmatpush.bf16.msra.mxu0 %v415
  %720 = vmatpush.bf16.msra.mxu0 %v411
  %721 = vmatpush.bf16.msra.mxu0 %v407
  %722 = vmatpush.bf16.msra.mxu0 %v403
  %723 = vmatmul.bf16.gmra.mxu0 %v714
  %v724 = vpop.f32.mrf.mxu0
  %v725 = vadd.f32 0.0, %v724
  %v726 = vpop.f32.mrf.mxu0
  %727 = vdwg.mxu0
  %728 = vmatpush.bf16.msra.mxu0 %v432
  %729 = vmatpush.bf16.msra.mxu0 %v428
  %730 = vmatpush.bf16.msra.mxu0 %v424
  %731 = vmatpush.bf16.msra.mxu0 %v420
  %732 = vmatpush.bf16.msra.mxu0 %v416
  %733 = vmatpush.bf16.msra.mxu0 %v412
  %734 = vmatpush.bf16.msra.mxu0 %v408
  %735 = vmatpush.bf16.msra.mxu0 %v404
  %736 = vmatmul.bf16.gmra.mxu0 %v714
  %v737 = vpop.f32.mrf.mxu0
  %v738 = vadd.f32 0.0, %v737
  %v739 = vpop.f32.mrf.mxu0
  %740 = vdwg.mxu0
  %741 = vmatpush.bf16.msra.mxu0 %v433
  %742 = vmatpush.bf16.msra.mxu0 %v429
  %743 = vmatpush.bf16.msra.mxu0 %v425
  %744 = vmatpush.bf16.msra.mxu0 %v421
  %745 = vmatpush.bf16.msra.mxu0 %v417
  %746 = vmatpush.bf16.msra.mxu0 %v413
  %747 = vmatpush.bf16.msra.mxu0 %v409
  %748 = vmatpush.bf16.msra.mxu0 %v405
  %749 = vmatmul.bf16.gmra.mxu0 %v714
  %v750 = vpop.f32.mrf.mxu0
  %v751 = vadd.f32 0.0, %v750
  %v752 = vpop.f32.mrf.mxu0
  %753 = vdwg.mxu0
  %754 = vmatpush.bf16.msra.mxu0 %v434
  %755 = vmatpush.bf16.msra.mxu0 %v430
  %756 = vmatpush.bf16.msra.mxu0 %v426
  %757 = vmatpush.bf16.msra.mxu0 %v422
  %758 = vmatpush.bf16.msra.mxu0 %v418
  %759 = vmatpush.bf16.msra.mxu0 %v414
  %760 = vmatpush.bf16.msra.mxu0 %v410
  %761 = vmatpush.bf16.msra.mxu0 %v406
  %762 = vmatmul.bf16.gmra.mxu0 %v714
  %v763 = vpop.f32.mrf.mxu0
  %v764 = vadd.f32 0.0, %v763
  %v765 = vpop.f32.mrf.mxu0
  %766 = vdwg.mxu0
  %v767 = vadd.f32 %v710, %v725
  %v768 = vadd.f32 %v711, %v738
  %v769 = vadd.f32 %v712, %v751
  %v770 = vadd.f32 %v713, %v764
  %v771 = vxor.u32 %v767, 2147483648
  %v772 = vxor.u32 %v768, 2147483648
  %v773 = vxor.u32 %v769, 2147483648
  %v774 = vmul.f32 %v771, 1.442695
  %v775 = vpow.pop %v774
  %v776 = vmul.f32 %v772, 1.442695
  %v777 = vpow.pop %v776
  %v778 = vmul.f32 %v773, 1.442695
  %v779 = vpow.pop %v778
  %v780 = vadd.f32 %v775, 1.0
  %v781 = vadd.f32 %v777, 1.0
  %v782 = vadd.f32 %v779, 1.0
  %v783 = vrcp.pop %v780
  %v784 = vmul.f32 %v780, %v783
  %v785 = vsub.f32 1.0, %v784
  %v786 = vmul.f32 %v783, %v785
  %v787 = vadd.f32 %v783, %v786
  %vm788 = vweird.f32 %v780
  %vm789 = vweird.f32 %v783
  %vm790 = vmor %vm788, %vm789
  %v791 = vsel %vm790, %v783, %v787
  %v792 = vand.u32 2147483647, %v780
  %vm793 = vcmp.eq.f32.partialorder %v792, 8.507059e+37
  %v794 = vand.u32 %v780, 2147483648
  %v795 = vor.u32 1.1754944e-38, %v794
  %v796 = vsel %vm793, %v795, %v791
  %v797 = vmul.f32 1.0, %v796
  %v798 = vrcp.pop %v781
  %v799 = vmul.f32 %v781, %v798
  %v800 = vsub.f32 1.0, %v799
  %v801 = vmul.f32 %v798, %v800
  %v802 = vadd.f32 %v798, %v801
  %vm803 = vweird.f32 %v781
  %vm804 = vweird.f32 %v798
  %vm805 = vmor %vm803, %vm804
  %v806 = vsel %vm805, %v798, %v802
  %v807 = vand.u32 2147483647, %v781
  %vm808 = vcmp.eq.f32.partialorder %v807, 8.507059e+37
  %v809 = vand.u32 %v781, 2147483648
  %v810 = vor.u32 1.1754944e-38, %v809
  %v811 = vsel %vm808, %v810, %v806
  %v812 = vmul.f32 1.0, %v811
  %v813 = vrcp.pop %v782
  %v814 = vmul.f32 %v782, %v813
  %v815 = vsub.f32 1.0, %v814
  %v816 = vmul.f32 %v813, %v815
  %v817 = vadd.f32 %v813, %v816
  %vm818 = vweird.f32 %v782
  %vm819 = vweird.f32 %v813
  %vm820 = vmor %vm818, %vm819
  %v821 = vsel %vm820, %v813, %v817
  %v822 = vand.u32 2147483647, %v782
  %vm823 = vcmp.eq.f32.partialorder %v822, 8.507059e+37
  %v824 = vand.u32 %v782, 2147483648
  %v825 = vor.u32 1.1754944e-38, %v824
  %v826 = vsel %vm823, %v825, %v821
  %v827 = vmul.f32 1.0, %v826
  %v828 = vtanh.pop %v770
  %v829 = vmul.f32 %v812, %v707
  %v830 = vmul.f32 %v797, %v828
  %v831 = vadd.f32 %v829, %v830
  %v832 = vtanh.pop %v831
  %v833 = vmul.f32 %v827, %v832
  %v834 = vld [vmem:[#allocation2 + $0x60] sm:$0xff]
  %v835 = vld [vmem:[#allocation2 + $0x68] sm:$0xff]
  %v836 = vld [vmem:[#allocation2 + $0x70] sm:$0xff]
  %v837 = vld [vmem:[#allocation2 + $0x78] sm:$0xff]
  %v838 = vpack.c.bf16 %v833, %v833
  %839 = vmatpush.bf16.msra.mxu0 %v431
  %840 = vmatpush.bf16.msra.mxu0 %v427
  %841 = vmatpush.bf16.msra.mxu0 %v423
  %842 = vmatpush.bf16.msra.mxu0 %v419
  %843 = vmatpush.bf16.msra.mxu0 %v415
  %844 = vmatpush.bf16.msra.mxu0 %v411
  %845 = vmatpush.bf16.msra.mxu0 %v407
  %846 = vmatpush.bf16.msra.mxu0 %v403
  %847 = vmatmul.bf16.gmra.mxu0 %v838
  %v848 = vpop.f32.mrf.mxu0
  %v849 = vadd.f32 0.0, %v848
  %v850 = vpop.f32.mrf.mxu0
  %851 = vdwg.mxu0
  %852 = vmatpush.bf16.msra.mxu0 %v432
  %853 = vmatpush.bf16.msra.mxu0 %v428
  %854 = vmatpush.bf16.msra.mxu0 %v424
  %855 = vmatpush.bf16.msra.mxu0 %v420
  %856 = vmatpush.bf16.msra.mxu0 %v416
  %857 = vmatpush.bf16.msra.mxu0 %v412
  %858 = vmatpush.bf16.msra.mxu0 %v408
  %859 = vmatpush.bf16.msra.mxu0 %v404
  %860 = vmatmul.bf16.gmra.mxu0 %v838
  %v861 = vpop.f32.mrf.mxu0
  %v862 = vadd.f32 0.0, %v861
  %v863 = vpop.f32.mrf.mxu0
  %864 = vdwg.mxu0
  %865 = vmatpush.bf16.msra.mxu0 %v433
  %866 = vmatpush.bf16.msra.mxu0 %v429
  %867 = vmatpush.bf16.msra.mxu0 %v425
  %868 = vmatpush.bf16.msra.mxu0 %v421
  %869 = vmatpush.bf16.msra.mxu0 %v417
  %870 = vmatpush.bf16.msra.mxu0 %v413
  %871 = vmatpush.bf16.msra.mxu0 %v409
  %872 = vmatpush.bf16.msra.mxu0 %v405
  %873 = vmatmul.bf16.gmra.mxu0 %v838
  %v874 = vpop.f32.mrf.mxu0
  %v875 = vadd.f32 0.0, %v874
  %v876 = vpop.f32.mrf.mxu0
  %877 = vdwg.mxu0
  %878 = vmatpush.bf16.msra.mxu0 %v434
  %879 = vmatpush.bf16.msra.mxu0 %v430
  %880 = vmatpush.bf16.msra.mxu0 %v426
  %881 = vmatpush.bf16.msra.mxu0 %v422
  %882 = vmatpush.bf16.msra.mxu0 %v418
  %883 = vmatpush.bf16.msra.mxu0 %v414
  %884 = vmatpush.bf16.msra.mxu0 %v410
  %885 = vmatpush.bf16.msra.mxu0 %v406
  %886 = vmatmul.bf16.gmra.mxu0 %v838
  %v887 = vpop.f32.mrf.mxu0
  %v888 = vadd.f32 0.0, %v887
  %v889 = vpop.f32.mrf.mxu0
  %890 = vdwg.mxu0
  %v891 = vadd.f32 %v834, %v849
  %v892 = vadd.f32 %v835, %v862
  %v893 = vadd.f32 %v836, %v875
  %v894 = vadd.f32 %v837, %v888
  %v895 = vxor.u32 %v891, 2147483648
  %v896 = vxor.u32 %v892, 2147483648
  %v897 = vxor.u32 %v893, 2147483648
  %v898 = vmul.f32 %v895, 1.442695
  %v899 = vpow.pop %v898
  %v900 = vmul.f32 %v896, 1.442695
  %v901 = vpow.pop %v900
  %v902 = vmul.f32 %v897, 1.442695
  %v903 = vpow.pop %v902
  %v904 = vadd.f32 %v899, 1.0
  %v905 = vadd.f32 %v901, 1.0
  %v906 = vadd.f32 %v903, 1.0
  %v907 = vrcp.pop %v904
  %v908 = vmul.f32 %v904, %v907
  %v909 = vsub.f32 1.0, %v908
  %v910 = vmul.f32 %v907, %v909
  %v911 = vadd.f32 %v907, %v910
  %vm912 = vweird.f32 %v904
  %vm913 = vweird.f32 %v907
  %vm914 = vmor %vm912, %vm913
  %v915 = vsel %vm914, %v907, %v911
  %v916 = vand.u32 2147483647, %v904
  %vm917 = vcmp.eq.f32.partialorder %v916, 8.507059e+37
  %v918 = vand.u32 %v904, 2147483648
  %v919 = vor.u32 1.1754944e-38, %v918
  %v920 = vsel %vm917, %v919, %v915
  %v921 = vmul.f32 1.0, %v920
  %v922 = vrcp.pop %v905
  %v923 = vmul.f32 %v905, %v922
  %v924 = vsub.f32 1.0, %v923
  %v925 = vmul.f32 %v922, %v924
  %v926 = vadd.f32 %v922, %v925
  %vm927 = vweird.f32 %v905
  %vm928 = vweird.f32 %v922
  %vm929 = vmor %vm927, %vm928
  %v930 = vsel %vm929, %v922, %v926
  %v931 = vand.u32 2147483647, %v905
  %vm932 = vcmp.eq.f32.partialorder %v931, 8.507059e+37
  %v933 = vand.u32 %v905, 2147483648
  %v934 = vor.u32 1.1754944e-38, %v933
  %v935 = vsel %vm932, %v934, %v930
  %v936 = vmul.f32 1.0, %v935
  %v937 = vrcp.pop %v906
  %v938 = vmul.f32 %v906, %v937
  %v939 = vsub.f32 1.0, %v938
  %v940 = vmul.f32 %v937, %v939
  %v941 = vadd.f32 %v937, %v940
  %vm942 = vweird.f32 %v906
  %vm943 = vweird.f32 %v937
  %vm944 = vmor %vm942, %vm943
  %v945 = vsel %vm944, %v937, %v941
  %v946 = vand.u32 2147483647, %v906
  %vm947 = vcmp.eq.f32.partialorder %v946, 8.507059e+37
  %v948 = vand.u32 %v906, 2147483648
  %v949 = vor.u32 1.1754944e-38, %v948
  %v950 = vsel %vm947, %v949, %v945
  %v951 = vmul.f32 1.0, %v950
  %v952 = vtanh.pop %v894
  %v953 = vmul.f32 %v936, %v831
  %v954 = vmul.f32 %v921, %v952
  %v955 = vadd.f32 %v953, %v954
  %v956 = vtanh.pop %v955
  %v957 = vmul.f32 %v951, %v956
  %v958 = vld [vmem:[#allocation2 + $0x80] sm:$0xff]
  %v959 = vld [vmem:[#allocation2 + $0x88] sm:$0xff]
  %v960 = vld [vmem:[#allocation2 + $0x90] sm:$0xff]
  %v961 = vld [vmem:[#allocation2 + $0x98] sm:$0xff]
  %v962 = vpack.c.bf16 %v957, %v957
  %963 = vmatpush.bf16.msra.mxu0 %v431
  %964 = vmatpush.bf16.msra.mxu0 %v427
  %965 = vmatpush.bf16.msra.mxu0 %v423
  %966 = vmatpush.bf16.msra.mxu0 %v419
  %967 = vmatpush.bf16.msra.mxu0 %v415
  %968 = vmatpush.bf16.msra.mxu0 %v411
  %969 = vmatpush.bf16.msra.mxu0 %v407
  %970 = vmatpush.bf16.msra.mxu0 %v403
  %971 = vmatmul.bf16.gmra.mxu0 %v962
  %v972 = vpop.f32.mrf.mxu0
  %v973 = vadd.f32 0.0, %v972
  %v974 = vpop.f32.mrf.mxu0
  %975 = vdwg.mxu0
  %976 = vmatpush.bf16.msra.mxu0 %v432
  %977 = vmatpush.bf16.msra.mxu0 %v428
  %978 = vmatpush.bf16.msra.mxu0 %v424
  %979 = vmatpush.bf16.msra.mxu0 %v420
  %980 = vmatpush.bf16.msra.mxu0 %v416
  %981 = vmatpush.bf16.msra.mxu0 %v412
  %982 = vmatpush.bf16.msra.mxu0 %v408
  %983 = vmatpush.bf16.msra.mxu0 %v404
  %984 = vmatmul.bf16.gmra.mxu0 %v962
  %v985 = vpop.f32.mrf.mxu0
  %v986 = vadd.f32 0.0, %v985
  %v987 = vpop.f32.mrf.mxu0
  %988 = vdwg.mxu0
  %989 = vmatpush.bf16.msra.mxu0 %v433
  %990 = vmatpush.bf16.msra.mxu0 %v429
  %991 = vmatpush.bf16.msra.mxu0 %v425
  %992 = vmatpush.bf16.msra.mxu0 %v421
  %993 = vmatpush.bf16.msra.mxu0 %v417
  %994 = vmatpush.bf16.msra.mxu0 %v413
  %995 = vmatpush.bf16.msra.mxu0 %v409
  %996 = vmatpush.bf16.msra.mxu0 %v405
  %997 = vmatmul.bf16.gmra.mxu0 %v962
  %v998 = vpop.f32.mrf.mxu0
  %v999 = vadd.f32 0.0, %v998
  %v1000 = vpop.f32.mrf.mxu0
  %1001 = vdwg.mxu0
  %1002 = vmatpush.bf16.msra.mxu0 %v434
  %1003 = vmatpush.bf16.msra.mxu0 %v430
  %1004 = vmatpush.bf16.msra.mxu0 %v426
  %1005 = vmatpush.bf16.msra.mxu0 %v422
  %1006 = vmatpush.bf16.msra.mxu0 %v418
  %1007 = vmatpush.bf16.msra.mxu0 %v414
  %1008 = vmatpush.bf16.msra.mxu0 %v410
  %1009 = vmatpush.bf16.msra.mxu0 %v406
  %1010 = vmatmul.bf16.gmra.mxu0 %v962
  %v1011 = vpop.f32.mrf.mxu0
  %v1012 = vadd.f32 0.0, %v1011
  %v1013 = vpop.f32.mrf.mxu0
  %1014 = vdwg.mxu0
  %v1015 = vadd.f32 %v958, %v973
  %v1016 = vadd.f32 %v959, %v986
  %v1017 = vadd.f32 %v960, %v999
  %v1018 = vadd.f32 %v961, %v1012
  %v1019 = vxor.u32 %v1015, 2147483648
  %v1020 = vxor.u32 %v1016, 2147483648
  %v1021 = vxor.u32 %v1017, 2147483648
  %v1022 = vmul.f32 %v1019, 1.442695
  %v1023 = vpow.pop %v1022
  %v1024 = vmul.f32 %v1020, 1.442695
  %v1025 = vpow.pop %v1024
  %v1026 = vmul.f32 %v1021, 1.442695
  %v1027 = vpow.pop %v1026
  %v1028 = vadd.f32 %v1023, 1.0
  %v1029 = vadd.f32 %v1025, 1.0
  %v1030 = vadd.f32 %v1027, 1.0
  %v1031 = vrcp.pop %v1028
  %v1032 = vmul.f32 %v1028, %v1031
  %v1033 = vsub.f32 1.0, %v1032
  %v1034 = vmul.f32 %v1031, %v1033
  %v1035 = vadd.f32 %v1031, %v1034
  %vm1036 = vweird.f32 %v1028
  %vm1037 = vweird.f32 %v1031
  %vm1038 = vmor %vm1036, %vm1037
  %v1039 = vsel %vm1038, %v1031, %v1035
  %v1040 = vand.u32 2147483647, %v1028
  %vm1041 = vcmp.eq.f32.partialorder %v1040, 8.507059e+37
  %v1042 = vand.u32 %v1028, 2147483648
  %v1043 = vor.u32 1.1754944e-38, %v1042
  %v1044 = vsel %vm1041, %v1043, %v1039
  %v1045 = vmul.f32 1.0, %v1044
  %v1046 = vrcp.pop %v1029
  %v1047 = vmul.f32 %v1029, %v1046
  %v1048 = vsub.f32 1.0, %v1047
  %v1049 = vmul.f32 %v1046, %v1048
  %v1050 = vadd.f32 %v1046, %v1049
  %vm1051 = vweird.f32 %v1029
  %vm1052 = vweird.f32 %v1046
  %vm1053 = vmor %vm1051, %vm1052
  %v1054 = vsel %vm1053, %v1046, %v1050
  %v1055 = vand.u32 2147483647, %v1029
  %vm1056 = vcmp.eq.f32.partialorder %v1055, 8.507059e+37
  %v1057 = vand.u32 %v1029, 2147483648
  %v1058 = vor.u32 1.1754944e-38, %v1057
  %v1059 = vsel %vm1056, %v1058, %v1054
  %v1060 = vmul.f32 1.0, %v1059
  %v1061 = vrcp.pop %v1030
  %v1062 = vmul.f32 %v1030, %v1061
  %v1063 = vsub.f32 1.0, %v1062
  %v1064 = vmul.f32 %v1061, %v1063
  %v1065 = vadd.f32 %v1061, %v1064
  %vm1066 = vweird.f32 %v1030
  %vm1067 = vweird.f32 %v1061
  %vm1068 = vmor %vm1066, %vm1067
  %v1069 = vsel %vm1068, %v1061, %v1065
  %v1070 = vand.u32 2147483647, %v1030
  %vm1071 = vcmp.eq.f32.partialorder %v1070, 8.507059e+37
  %v1072 = vand.u32 %v1030, 2147483648
  %v1073 = vor.u32 1.1754944e-38, %v1072
  %v1074 = vsel %vm1071, %v1073, %v1069
  %v1075 = vmul.f32 1.0, %v1074
  %v1076 = vtanh.pop %v1018
  %v1077 = vmul.f32 %v1060, %v955
  %v1078 = vmul.f32 %v1045, %v1076
  %v1079 = vadd.f32 %v1077, %v1078
  %v1080 = vtanh.pop %v1079
  %v1081 = vmul.f32 %v1075, %v1080
  %v1082 = vld [vmem:[#allocation2 + $0xa0] sm:$0xff]
  %v1083 = vld [vmem:[#allocation2 + $0xa8] sm:$0xff]
  %v1084 = vld [vmem:[#allocation2 + $0xb0] sm:$0xff]
  %v1085 = vld [vmem:[#allocation2 + $0xb8] sm:$0xff]
  %v1086 = vpack.c.bf16 %v1081, %v1081
  %1087 = vmatpush.bf16.msra.mxu0 %v431
  %1088 = vmatpush.bf16.msra.mxu0 %v427
  %1089 = vmatpush.bf16.msra.mxu0 %v423
  %1090 = vmatpush.bf16.msra.mxu0 %v419
  %1091 = vmatpush.bf16.msra.mxu0 %v415
  %1092 = vmatpush.bf16.msra.mxu0 %v411
  %1093 = vmatpush.bf16.msra.mxu0 %v407
  %1094 = vmatpush.bf16.msra.mxu0 %v403
  %1095 = vmatmul.bf16.gmra.mxu0 %v1086
  %v1096 = vpop.f32.mrf.mxu0
  %v1097 = vadd.f32 0.0, %v1096
  %v1098 = vpop.f32.mrf.mxu0
  %1099 = vdwg.mxu0
  %1100 = vmatpush.bf16.msra.mxu0 %v432
  %1101 = vmatpush.bf16.msra.mxu0 %v428
  %1102 = vmatpush.bf16.msra.mxu0 %v424
  %1103 = vmatpush.bf16.msra.mxu0 %v420
  %1104 = vmatpush.bf16.msra.mxu0 %v416
  %1105 = vmatpush.bf16.msra.mxu0 %v412
  %1106 = vmatpush.bf16.msra.mxu0 %v408
  %1107 = vmatpush.bf16.msra.mxu0 %v404
  %1108 = vmatmul.bf16.gmra.mxu0 %v1086
  %v1109 = vpop.f32.mrf.mxu0
  %v1110 = vadd.f32 0.0, %v1109
  %v1111 = vpop.f32.mrf.mxu0
  %1112 = vdwg.mxu0
  %1113 = vmatpush.bf16.msra.mxu0 %v433
  %1114 = vmatpush.bf16.msra.mxu0 %v429
  %1115 = vmatpush.bf16.msra.mxu0 %v425
  %1116 = vmatpush.bf16.msra.mxu0 %v421
  %1117 = vmatpush.bf16.msra.mxu0 %v417
  %1118 = vmatpush.bf16.msra.mxu0 %v413
  %1119 = vmatpush.bf16.msra.mxu0 %v409
  %1120 = vmatpush.bf16.msra.mxu0 %v405
  %1121 = vmatmul.bf16.gmra.mxu0 %v1086
  %v1122 = vpop.f32.mrf.mxu0
  %v1123 = vadd.f32 0.0, %v1122
  %v1124 = vpop.f32.mrf.mxu0
  %1125 = vdwg.mxu0
  %1126 = vmatpush.bf16.msra.mxu0 %v434
  %1127 = vmatpush.bf16.msra.mxu0 %v430
  %1128 = vmatpush.bf16.msra.mxu0 %v426
  %1129 = vmatpush.bf16.msra.mxu0 %v422
  %1130 = vmatpush.bf16.msra.mxu0 %v418
  %1131 = vmatpush.bf16.msra.mxu0 %v414
  %1132 = vmatpush.bf16.msra.mxu0 %v410
  %1133 = vmatpush.bf16.msra.mxu0 %v406
  %1134 = vmatmul.bf16.gmra.mxu0 %v1086
  %v1135 = vpop.f32.mrf.mxu0
  %v1136 = vadd.f32 0.0, %v1135
  %v1137 = vpop.f32.mrf.mxu0
  %1138 = vdwg.mxu0
  %v1139 = vadd.f32 %v1082, %v1097
  %v1140 = vadd.f32 %v1083, %v1110
  %v1141 = vadd.f32 %v1084, %v1123
  %v1142 = vadd.f32 %v1085, %v1136
  %v1143 = vxor.u32 %v1139, 2147483648
  %v1144 = vxor.u32 %v1140, 2147483648
  %v1145 = vxor.u32 %v1141, 2147483648
  %v1146 = vmul.f32 %v1143, 1.442695
  %v1147 = vpow.pop %v1146
  %v1148 = vmul.f32 %v1144, 1.442695
  %v1149 = vpow.pop %v1148
  %v1150 = vmul.f32 %v1145, 1.442695
  %v1151 = vpow.pop %v1150
  %v1152 = vadd.f32 %v1147, 1.0
  %v1153 = vadd.f32 %v1149, 1.0
  %v1154 = vadd.f32 %v1151, 1.0
  %v1155 = vrcp.pop %v1152
  %v1156 = vmul.f32 %v1152, %v1155
  %v1157 = vsub.f32 1.0, %v1156
  %v1158 = vmul.f32 %v1155, %v1157
  %v1159 = vadd.f32 %v1155, %v1158
  %vm1160 = vweird.f32 %v1152
  %vm1161 = vweird.f32 %v1155
  %vm1162 = vmor %vm1160, %vm1161
  %v1163 = vsel %vm1162, %v1155, %v1159
  %v1164 = vand.u32 2147483647, %v1152
  %vm1165 = vcmp.eq.f32.partialorder %v1164, 8.507059e+37
  %v1166 = vand.u32 %v1152, 2147483648
  %v1167 = vor.u32 1.1754944e-38, %v1166
  %v1168 = vsel %vm1165, %v1167, %v1163
  %v1169 = vmul.f32 1.0, %v1168
  %v1170 = vrcp.pop %v1153
  %v1171 = vmul.f32 %v1153, %v1170
  %v1172 = vsub.f32 1.0, %v1171
  %v1173 = vmul.f32 %v1170, %v1172
  %v1174 = vadd.f32 %v1170, %v1173
  %vm1175 = vweird.f32 %v1153
  %vm1176 = vweird.f32 %v1170
  %vm1177 = vmor %vm1175, %vm1176
  %v1178 = vsel %vm1177, %v1170, %v1174
  %v1179 = vand.u32 2147483647, %v1153
  %vm1180 = vcmp.eq.f32.partialorder %v1179, 8.507059e+37
  %v1181 = vand.u32 %v1153, 2147483648
  %v1182 = vor.u32 1.1754944e-38, %v1181
  %v1183 = vsel %vm1180, %v1182, %v1178
  %v1184 = vmul.f32 1.0, %v1183
  %v1185 = vrcp.pop %v1154
  %v1186 = vmul.f32 %v1154, %v1185
  %v1187 = vsub.f32 1.0, %v1186
  %v1188 = vmul.f32 %v1185, %v1187
  %v1189 = vadd.f32 %v1185, %v1188
  %vm1190 = vweird.f32 %v1154
  %vm1191 = vweird.f32 %v1185
  %vm1192 = vmor %vm1190, %vm1191
  %v1193 = vsel %vm1192, %v1185, %v1189
  %v1194 = vand.u32 2147483647, %v1154
  %vm1195 = vcmp.eq.f32.partialorder %v1194, 8.507059e+37
  %v1196 = vand.u32 %v1154, 2147483648
  %v1197 = vor.u32 1.1754944e-38, %v1196
  %v1198 = vsel %vm1195, %v1197, %v1193
  %v1199 = vmul.f32 1.0, %v1198
  %v1200 = vtanh.pop %v1142
  %v1201 = vmul.f32 %v1184, %v1079
  %v1202 = vmul.f32 %v1169, %v1200
  %v1203 = vadd.f32 %v1201, %v1202
  %v1204 = vtanh.pop %v1203
  %v1205 = vmul.f32 %v1199, %v1204
  %v1206 = vld [vmem:[#allocation2 + $0xc0] sm:$0xff]
  %v1207 = vld [vmem:[#allocation2 + $0xc8] sm:$0xff]
  %v1208 = vld [vmem:[#allocation2 + $0xd0] sm:$0xff]
  %v1209 = vld [vmem:[#allocation2 + $0xd8] sm:$0xff]
  %v1210 = vpack.c.bf16 %v1205, %v1205
  %1211 = vmatpush.bf16.msra.mxu0 %v431
  %1212 = vmatpush.bf16.msra.mxu0 %v427
  %1213 = vmatpush.bf16.msra.mxu0 %v423
  %1214 = vmatpush.bf16.msra.mxu0 %v419
  %1215 = vmatpush.bf16.msra.mxu0 %v415
  %1216 = vmatpush.bf16.msra.mxu0 %v411
  %1217 = vmatpush.bf16.msra.mxu0 %v407
  %1218 = vmatpush.bf16.msra.mxu0 %v403
  %1219 = vmatmul.bf16.gmra.mxu0 %v1210
  %v1220 = vpop.f32.mrf.mxu0
  %v1221 = vadd.f32 0.0, %v1220
  %v1222 = vpop.f32.mrf.mxu0
  %1223 = vdwg.mxu0
  %1224 = vmatpush.bf16.msra.mxu0 %v432
  %1225 = vmatpush.bf16.msra.mxu0 %v428
  %1226 = vmatpush.bf16.msra.mxu0 %v424
  %1227 = vmatpush.bf16.msra.mxu0 %v420
  %1228 = vmatpush.bf16.msra.mxu0 %v416
  %1229 = vmatpush.bf16.msra.mxu0 %v412
  %1230 = vmatpush.bf16.msra.mxu0 %v408
  %1231 = vmatpush.bf16.msra.mxu0 %v404
  %1232 = vmatmul.bf16.gmra.mxu0 %v1210
  %v1233 = vpop.f32.mrf.mxu0
  %v1234 = vadd.f32 0.0, %v1233
  %v1235 = vpop.f32.mrf.mxu0
  %1236 = vdwg.mxu0
  %1237 = vmatpush.bf16.msra.mxu0 %v433
  %1238 = vmatpush.bf16.msra.mxu0 %v429
  %1239 = vmatpush.bf16.msra.mxu0 %v425
  %1240 = vmatpush.bf16.msra.mxu0 %v421
  %1241 = vmatpush.bf16.msra.mxu0 %v417
  %1242 = vmatpush.bf16.msra.mxu0 %v413
  %1243 = vmatpush.bf16.msra.mxu0 %v409
  %1244 = vmatpush.bf16.msra.mxu0 %v405
  %1245 = vmatmul.bf16.gmra.mxu0 %v1210
  %v1246 = vpop.f32.mrf.mxu0
  %v1247 = vadd.f32 0.0, %v1246
  %v1248 = vpop.f32.mrf.mxu0
  %1249 = vdwg.mxu0
  %1250 = vmatpush.bf16.msra.mxu0 %v434
  %1251 = vmatpush.bf16.msra.mxu0 %v430
  %1252 = vmatpush.bf16.msra.mxu0 %v426
  %1253 = vmatpush.bf16.msra.mxu0 %v422
  %1254 = vmatpush.bf16.msra.mxu0 %v418
  %1255 = vmatpush.bf16.msra.mxu0 %v414
  %1256 = vmatpush.bf16.msra.mxu0 %v410
  %1257 = vmatpush.bf16.msra.mxu0 %v406
  %1258 = vmatmul.bf16.gmra.mxu0 %v1210
  %v1259 = vpop.f32.mrf.mxu0
  %v1260 = vadd.f32 0.0, %v1259
  %v1261 = vpop.f32.mrf.mxu0
  %1262 = vdwg.mxu0
  %v1263 = vadd.f32 %v1206, %v1221
  %v1264 = vadd.f32 %v1207, %v1234
  %v1265 = vadd.f32 %v1208, %v1247
  %v1266 = vadd.f32 %v1209, %v1260
  %v1267 = vxor.u32 %v1263, 2147483648
  %v1268 = vxor.u32 %v1264, 2147483648
  %v1269 = vxor.u32 %v1265, 2147483648
  %v1270 = vmul.f32 %v1267, 1.442695
  %v1271 = vpow.pop %v1270
  %v1272 = vmul.f32 %v1268, 1.442695
  %v1273 = vpow.pop %v1272
  %v1274 = vmul.f32 %v1269, 1.442695
  %v1275 = vpow.pop %v1274
  %v1276 = vadd.f32 %v1271, 1.0
  %v1277 = vadd.f32 %v1273, 1.0
  %v1278 = vadd.f32 %v1275, 1.0
  %v1279 = vrcp.pop %v1276
  %v1280 = vmul.f32 %v1276, %v1279
  %v1281 = vsub.f32 1.0, %v1280
  %v1282 = vmul.f32 %v1279, %v1281
  %v1283 = vadd.f32 %v1279, %v1282
  %vm1284 = vweird.f32 %v1276
  %vm1285 = vweird.f32 %v1279
  %vm1286 = vmor %vm1284, %vm1285
  %v1287 = vsel %vm1286, %v1279, %v1283
  %v1288 = vand.u32 2147483647, %v1276
  %vm1289 = vcmp.eq.f32.partialorder %v1288, 8.507059e+37
  %v1290 = vand.u32 %v1276, 2147483648
  %v1291 = vor.u32 1.1754944e-38, %v1290
  %v1292 = vsel %vm1289, %v1291, %v1287
  %v1293 = vmul.f32 1.0, %v1292
  %v1294 = vrcp.pop %v1277
  %v1295 = vmul.f32 %v1277, %v1294
  %v1296 = vsub.f32 1.0, %v1295
  %v1297 = vmul.f32 %v1294, %v1296
  %v1298 = vadd.f32 %v1294, %v1297
  %vm1299 = vweird.f32 %v1277
  %vm1300 = vweird.f32 %v1294
  %vm1301 = vmor %vm1299, %vm1300
  %v1302 = vsel %vm1301, %v1294, %v1298
  %v1303 = vand.u32 2147483647, %v1277
  %vm1304 = vcmp.eq.f32.partialorder %v1303, 8.507059e+37
  %v1305 = vand.u32 %v1277, 2147483648
  %v1306 = vor.u32 1.1754944e-38, %v1305
  %v1307 = vsel %vm1304, %v1306, %v1302
  %v1308 = vmul.f32 1.0, %v1307
  %v1309 = vrcp.pop %v1278
  %v1310 = vmul.f32 %v1278, %v1309
  %v1311 = vsub.f32 1.0, %v1310
  %v1312 = vmul.f32 %v1309, %v1311
  %v1313 = vadd.f32 %v1309, %v1312
  %vm1314 = vweird.f32 %v1278
  %vm1315 = vweird.f32 %v1309
  %vm1316 = vmor %vm1314, %vm1315
  %v1317 = vsel %vm1316, %v1309, %v1313
  %v1318 = vand.u32 2147483647, %v1278
  %vm1319 = vcmp.eq.f32.partialorder %v1318, 8.507059e+37
  %v1320 = vand.u32 %v1278, 2147483648
  %v1321 = vor.u32 1.1754944e-38, %v1320
  %v1322 = vsel %vm1319, %v1321, %v1317
  %v1323 = vmul.f32 1.0, %v1322
  %v1324 = vtanh.pop %v1266
  %v1325 = vmul.f32 %v1308, %v1203
  %v1326 = vmul.f32 %v1293, %v1324
  %v1327 = vadd.f32 %v1325, %v1326
  %v1328 = vtanh.pop %v1327
  %v1329 = vmul.f32 %v1323, %v1328
  %v1330 = vld [vmem:[#allocation2 + $0xe0] sm:$0xff]
  %v1331 = vld [vmem:[#allocation2 + $0xe8] sm:$0xff]
  %v1332 = vld [vmem:[#allocation2 + $0xf0] sm:$0xff]
  %v1333 = vld [vmem:[#allocation2 + $0xf8] sm:$0xff]
  %v1334 = vpack.c.bf16 %v1329, %v1329
  %1335 = vmatpush.bf16.msra.mxu0 %v431
  %1336 = vmatpush.bf16.msra.mxu0 %v427
  %1337 = vmatpush.bf16.msra.mxu0 %v423
  %1338 = vmatpush.bf16.msra.mxu0 %v419
  %1339 = vmatpush.bf16.msra.mxu0 %v415
  %1340 = vmatpush.bf16.msra.mxu0 %v411
  %1341 = vmatpush.bf16.msra.mxu0 %v407
  %1342 = vmatpush.bf16.msra.mxu0 %v403
  %1343 = vmatmul.bf16.gmra.mxu0 %v1334
  %v1344 = vpop.f32.mrf.mxu0
  %v1345 = vadd.f32 0.0, %v1344
  %v1346 = vpop.f32.mrf.mxu0
  %1347 = vdwg.mxu0
  %1348 = vmatpush.bf16.msra.mxu0 %v432
  %1349 = vmatpush.bf16.msra.mxu0 %v428
  %1350 = vmatpush.bf16.msra.mxu0 %v424
  %1351 = vmatpush.bf16.msra.mxu0 %v420
  %1352 = vmatpush.bf16.msra.mxu0 %v416
  %1353 = vmatpush.bf16.msra.mxu0 %v412
  %1354 = vmatpush.bf16.msra.mxu0 %v408
  %1355 = vmatpush.bf16.msra.mxu0 %v404
  %1356 = vmatmul.bf16.gmra.mxu0 %v1334
  %v1357 = vpop.f32.mrf.mxu0
  %v1358 = vadd.f32 0.0, %v1357
  %v1359 = vpop.f32.mrf.mxu0
  %1360 = vdwg.mxu0
  %1361 = vmatpush.bf16.msra.mxu0 %v433
  %1362 = vmatpush.bf16.msra.mxu0 %v429
  %1363 = vmatpush.bf16.msra.mxu0 %v425
  %1364 = vmatpush.bf16.msra.mxu0 %v421
  %1365 = vmatpush.bf16.msra.mxu0 %v417
  %1366 = vmatpush.bf16.msra.mxu0 %v413
  %1367 = vmatpush.bf16.msra.mxu0 %v409
  %1368 = vmatpush.bf16.msra.mxu0 %v405
  %1369 = vmatmul.bf16.gmra.mxu0 %v1334
  %v1370 = vpop.f32.mrf.mxu0
  %v1371 = vadd.f32 0.0, %v1370
  %v1372 = vpop.f32.mrf.mxu0
  %1373 = vdwg.mxu0
  %1374 = vmatpush.bf16.msra.mxu0 %v434
  %1375 = vmatpush.bf16.msra.mxu0 %v430
  %1376 = vmatpush.bf16.msra.mxu0 %v426
  %1377 = vmatpush.bf16.msra.mxu0 %v422
  %1378 = vmatpush.bf16.msra.mxu0 %v418
  %1379 = vmatpush.bf16.msra.mxu0 %v414
  %1380 = vmatpush.bf16.msra.mxu0 %v410
  %1381 = vmatpush.bf16.msra.mxu0 %v406
  %1382 = vmatmul.bf16.gmra.mxu0 %v1334
  %v1383 = vpop.f32.mrf.mxu0
  %v1384 = vadd.f32 0.0, %v1383
  %v1385 = vpop.f32.mrf.mxu0
  %1386 = vdwg.mxu0
  %v1387 = vadd.f32 %v1330, %v1345
  %v1388 = vadd.f32 %v1331, %v1358
  %v1389 = vadd.f32 %v1332, %v1371
  %v1390 = vadd.f32 %v1333, %v1384
  %v1391 = vxor.u32 %v1387, 2147483648
  %v1392 = vxor.u32 %v1388, 2147483648
  %v1393 = vxor.u32 %v1389, 2147483648
  %v1394 = vmul.f32 %v1391, 1.442695
  %v1395 = vpow.pop %v1394
  %v1396 = vmul.f32 %v1392, 1.442695
  %v1397 = vpow.pop %v1396
  %v1398 = vmul.f32 %v1393, 1.442695
  %v1399 = vpow.pop %v1398
  %v1400 = vadd.f32 %v1395, 1.0
  %v1401 = vadd.f32 %v1397, 1.0
  %v1402 = vadd.f32 %v1399, 1.0
  %v1403 = vrcp.pop %v1400
  %v1404 = vmul.f32 %v1400, %v1403
  %v1405 = vsub.f32 1.0, %v1404
  %v1406 = vmul.f32 %v1403, %v1405
  %v1407 = vadd.f32 %v1403, %v1406
  %vm1408 = vweird.f32 %v1400
  %vm1409 = vweird.f32 %v1403
  %vm1410 = vmor %vm1408, %vm1409
  %v1411 = vsel %vm1410, %v1403, %v1407
  %v1412 = vand.u32 2147483647, %v1400
  %vm1413 = vcmp.eq.f32.partialorder %v1412, 8.507059e+37
  %v1414 = vand.u32 %v1400, 2147483648
  %v1415 = vor.u32 1.1754944e-38, %v1414
  %v1416 = vsel %vm1413, %v1415, %v1411
  %v1417 = vmul.f32 1.0, %v1416
  %v1418 = vrcp.pop %v1401
  %v1419 = vmul.f32 %v1401, %v1418
  %v1420 = vsub.f32 1.0, %v1419
  %v1421 = vmul.f32 %v1418, %v1420
  %v1422 = vadd.f32 %v1418, %v1421
  %vm1423 = vweird.f32 %v1401
  %vm1424 = vweird.f32 %v1418
  %vm1425 = vmor %vm1423, %vm1424
  %v1426 = vsel %vm1425, %v1418, %v1422
  %v1427 = vand.u32 2147483647, %v1401
  %vm1428 = vcmp.eq.f32.partialorder %v1427, 8.507059e+37
  %v1429 = vand.u32 %v1401, 2147483648
  %v1430 = vor.u32 1.1754944e-38, %v1429
  %v1431 = vsel %vm1428, %v1430, %v1426
  %v1432 = vmul.f32 1.0, %v1431
  %v1433 = vrcp.pop %v1402
  %v1434 = vmul.f32 %v1402, %v1433
  %v1435 = vsub.f32 1.0, %v1434
  %v1436 = vmul.f32 %v1433, %v1435
  %v1437 = vadd.f32 %v1433, %v1436
  %vm1438 = vweird.f32 %v1402
  %vm1439 = vweird.f32 %v1433
  %vm1440 = vmor %vm1438, %vm1439
  %v1441 = vsel %vm1440, %v1433, %v1437
  %v1442 = vand.u32 2147483647, %v1402
  %vm1443 = vcmp.eq.f32.partialorder %v1442, 8.507059e+37
  %v1444 = vand.u32 %v1402, 2147483648
  %v1445 = vor.u32 1.1754944e-38, %v1444
  %v1446 = vsel %vm1443, %v1445, %v1441
  %v1447 = vmul.f32 1.0, %v1446
  %v1448 = vtanh.pop %v1390
  %v1449 = vmul.f32 %v1432, %v1327
  %v1450 = vmul.f32 %v1417, %v1448
  %v1451 = vadd.f32 %v1449, %v1450
  %v1452 = vtanh.pop %v1451
  %v1453 = vmul.f32 %v1447, %v1452
  %v1454 = vpack.c.bf16 %v1453, %v1453
  %v1455 = vld [vmem:[%s4] sm:$0xf]
  %v1456 = vld [vmem:[%s4 + $0x4] sm:$0xf]
  %v1457 = vld [vmem:[%s4 + $0x8] sm:$0xf]
  %v1458 = vld [vmem:[%s4 + $0xc] sm:$0xf]
  %v1459 = vld [vmem:[%s4 + $0x10] sm:$0xf]
  %v1460 = vld [vmem:[%s4 + $0x14] sm:$0xf]
  %v1461 = vld [vmem:[%s4 + $0x18] sm:$0xf]
  %v1462 = vld [vmem:[%s4 + $0x1c] sm:$0xf]
  %v1463 = vld [vmem:[%s4 + $0x20] sm:$0xf]
  %v1464 = vld [vmem:[%s4 + $0x24] sm:$0xf]
  %v1465 = vld [vmem:[%s4 + $0x28] sm:$0xf]
  %v1466 = vld [vmem:[%s4 + $0x2c] sm:$0xf]
  %v1467 = vld [vmem:[%s4 + $0x30] sm:$0xf]
  %v1468 = vld [vmem:[%s4 + $0x34] sm:$0xf]
  %v1469 = vld [vmem:[%s4 + $0x38] sm:$0xf]
  %v1470 = vld [vmem:[%s4 + $0x3c] sm:$0xf]
  %v1471 = vld [vmem:[%s5] sm:$0x1]
  %v1473 = vperm.slane %v1471, 0
  %v1491 = vunpack.c.l.b16 %v1455
  %v1492 = vunpack.c.l.b16 %v1456
  %v1493 = vunpack.c.l.b16 %v1457
  %v1494 = vunpack.c.l.b16 %v1458
  %v1495 = vunpack.c.l.b16 %v1459
  %v1496 = vunpack.c.l.b16 %v1460
  %v1497 = vunpack.c.l.b16 %v1461
  %v1498 = vunpack.c.l.b16 %v1462
  %v1499 = vunpack.c.l.b16 %v1463
  %v1500 = vunpack.c.l.b16 %v1464
  %v1501 = vunpack.c.l.b16 %v1465
  %v1502 = vunpack.c.l.b16 %v1466
  %v1503 = vunpack.c.l.b16 %v1467
  %v1504 = vunpack.c.l.b16 %v1468
  %v1505 = vunpack.c.l.b16 %v1469
  %v1506 = vunpack.c.l.b16 %v1470
  %v1507 = vpack.c.b16 %v1492, %v1491
  %v1508 = vpack.c.b16 %v1494, %v1493
  %v1509 = vpack.c.b16 %v1496, %v1495
  %v1510 = vpack.c.b16 %v1498, %v1497
  %v1511 = vpack.c.b16 %v1500, %v1499
  %v1512 = vpack.c.b16 %v1502, %v1501
  %v1513 = vpack.c.b16 %v1504, %v1503
  %v1514 = vpack.c.b16 %v1506, %v1505
  %1523 = vmatpush.bf16.msra.mxu0 %v1514
  %1524 = vmatpush.bf16.msra.mxu0 %v1513
  %1525 = vmatpush.bf16.msra.mxu0 %v1512
  %1526 = vmatpush.bf16.msra.mxu0 %v1511
  %1527 = vmatpush.bf16.msra.mxu0 %v1510
  %1528 = vmatpush.bf16.msra.mxu0 %v1509
  %1529 = vmatpush.bf16.msra.mxu0 %v1508
  %1530 = vmatpush.bf16.msra.mxu0 %v1507
  %1531 = vmatmul.bf16.gmra.mxu0 %v1454
  %v1532 = vpop.f32.mrf.mxu0
  %v1533 = vadd.f32 %v1473, %v1532
  %v1534 = vpop.f32.mrf.mxu0
  %1535 = vdwg.mxu0
  %1536 = vst [vmem:[%s6] sm:$0xff] %v1533
  // Predicated region
  $region26: #{rnn_forward.1} parent=0 // pred_check
    _
  $region27: #{rnn_forward.1} parent=0 // pred_check_branch
    %1538 = sbr.rel (0) target = $region29
  $region28: #{rnn_forward.1} parent=0 // pred_region
    _
  $region29: #{rnn_forward.1} parent=0 // pred_fallthru
    _
  // Predicated region
  $region30: #{rnn_forward.1} parent=0 // pred_check
    _
  $region31: #{rnn_forward.1} parent=0 // pred_check_branch
    %1540 = sbr.rel (0) target = $region33
  $region32: #{rnn_forward.1} parent=0 // pred_region
    _
  $region33: #{rnn_forward.1} parent=0 // pred_fallthru
    _

</llo_original>
